<compile_context>
chip_gen: v7x
topology: tpu7x:2x2x1
jax: 0.10.0
libtpu: 0.0.40
codegen_flags: <defaults>
</compile_context>

<pallas_src>
import jax
import jax.numpy as jnp
from jax.experimental import pallas as pl
from jax.experimental.pallas import tpu as pltpu

PAD = 128  # lane-dense feature padding


# ----------------------------------------------------------------------------- #
# Kernel: one block of rows, all three layers fused, weights resident in VMEM.
# ----------------------------------------------------------------------------- #
def mlp_kernel(x_ref, w_ref, o_ref):
    # x_ref: (block_rows, 128) in compute dtype (f32 or bf16).
    # w_ref: (3, 128, 128) packed weights (bias folded in via the ones column).
    # o_ref: (block_rows, 128) f32; only column 0 is meaningful.
    x = x_ref[...]
    cdt = x_ref.dtype

    h = jnp.dot(x, w_ref[0], preferred_element_type=jnp.float32)      # fc1 (+b1)
    h = jnp.maximum(h, 0.0).astype(cdt)                                # relu in f32

    h = jnp.dot(h, w_ref[1], preferred_element_type=jnp.float32)      # fc2 (+b2)
    h = jnp.maximum(h, 0.0).astype(cdt)

    y = jnp.dot(h, w_ref[2], preferred_element_type=jnp.float32)      # out (+b3)
    o_ref[...] = y.astype(o_ref.dtype)


# ----------------------------------------------------------------------------- #
# Host-side parameter packing: one (3, PAD, PAD) tensor, bias folded in.
# An extra "ones" input column at index in_feat carries the bias through layer 1;
# a 1.0 passthrough at column h1 (resp. h2) keeps that ones column alive so the
# next layer's bias folds in the same way.
# ----------------------------------------------------------------------------- #
def pack_params(params, dtype=jnp.float32, pad=PAD):
    w1, b1, w2, b2, w3, b3 = params            # w: (fan_in, fan_out), b: (1, fan_out)
    in_feat, h1 = w1.shape
    h2 = w2.shape[1]
    out_feat = w3.shape[1]
    assert max(in_feat + 1, h1 + 1, h2 + 1, out_feat) <= pad

    W = jnp.zeros((3, pad, pad), jnp.float32)
    # layer 1
    W = W.at[0, :in_feat, :h1].set(w1)
    W = W.at[0, in_feat, :h1].set(b1[0])
    W = W.at[0, in_feat, h1].set(1.0)          # propagate the ones column -> col h1
    # layer 2
    W = W.at[1, :h1, :h2].set(w2)
    W = W.at[1, h1, :h2].set(b2[0])
    W = W.at[1, h1, h2].set(1.0)               # propagate the ones column -> col h2
    # layer 3 (no relu, no further propagation needed)
    W = W.at[2, :h2, :out_feat].set(w3)
    W = W.at[2, h2, :out_feat].set(b3[0])
    return W.astype(dtype)


# ----------------------------------------------------------------------------- #
# Wrapper: pad x to (Bp, 128) with the ones column, run the batched grid, slice.
# ----------------------------------------------------------------------------- #
def mlp_forward(x, w_packed, out_features, *, block_rows=512,
                compute_dtype=jnp.float32):
    B, in_feat = x.shape
    n_blocks = pl.cdiv(B, block_rows)
    Bp = n_blocks * block_rows

    xp = jnp.zeros((Bp, PAD), compute_dtype)
    xp = xp.at[:B, :in_feat].set(x.astype(compute_dtype))
    xp = xp.at[:B, in_feat].set(jnp.asarray(1.0, compute_dtype))   # bias column

    out = pl.pallas_call(
        mlp_kernel,
        out_shape=jax.ShapeDtypeStruct((Bp, PAD), jnp.float32),
        grid_spec=pltpu.PrefetchScalarGridSpec(
            num_scalar_prefetch=0,
            grid=(n_blocks,),
            in_specs=[
                # activations: one lane-dense (block_rows, 128) tile per grid step
                pl.BlockSpec((block_rows, PAD), lambda i: (i, 0)),
                # packed weights: same block every step -> stays VMEM-resident
                pl.BlockSpec((3, PAD, PAD), lambda i: (0, 0, 0)),
            ],
            out_specs=pl.BlockSpec((block_rows, PAD), lambda i: (i, 0)),
        ),
        compiler_params=pltpu.CompilerParams(
            dimension_semantics=("parallel",),   # v7x: shard batch over both TCs
        ),
    )(xp, w_packed.astype(compute_dtype))

    return out[:B, :out_features]


# ----------------------------------------------------------------------------- #
# Reference / init (PyTorch nn.Linear semantics, weights stored (fan_in, fan_out)).
# ----------------------------------------------------------------------------- #
def init_params(key, in_feat=5, h1=8, h2=8, out_feat=1):
    ks = jax.random.split(key, 6)

    def lin(kw, kb, fan_in, fan_out):
        bound = 1.0 / jnp.sqrt(fan_in)
        w = jax.random.uniform(kw, (fan_in, fan_out), jnp.float32, -bound, bound)
        b = jax.random.uniform(kb, (1, fan_out), jnp.float32, -bound, bound)
        return w, b

    w1, b1 = lin(ks[0], ks[1], in_feat, h1)
    w2, b2 = lin(ks[2], ks[3], h1, h2)
    w3, b3 = lin(ks[4], ks[5], h2, out_feat)
    return (w1, b1, w2, b2, w3, b3)


def mlp_reference(x, params):
    w1, b1, w2, b2, w3, b3 = params
    h = jax.nn.relu(x @ w1 + b1)
    h = jax.nn.relu(h @ w2 + b2)
    return h @ w3 + b3


if __name__ == "__main__":
    key = jax.random.PRNGKey(0)
    k_x, k_p = jax.random.split(key)

    B, IN, H1, H2, OUT = 2048, 5, 8, 8, 1          # batched: many rows per call
    x = jax.random.normal(k_x, (B, IN), dtype=jnp.float32)
    params = init_params(k_p, IN, H1, H2, OUT)
    y_ref = mlp_reference(x, params)

    # f32 compute path (matches the f32 PyTorch reference closely)
    wp_f32 = pack_params(params, dtype=jnp.float32)
    y = jax.block_until_ready(
        mlp_forward(x, wp_f32, OUT, block_rows=512, compute_dtype=jnp.float32))
    assert y.shape == (B, OUT)
    assert jnp.allclose(y, y_ref, atol=5e-4, rtol=5e-4)

    # bf16 compute path (native v6e/v7x MXU, halved activation/weight DMA bytes);
    # looser tolerance because inputs/weights are rounded to bf16.
    wp_bf16 = pack_params(params, dtype=jnp.bfloat16)
    y16 = jax.block_until_ready(
        mlp_forward(x, wp_bf16, OUT, block_rows=512, compute_dtype=jnp.bfloat16))
    assert y16.shape == (B, OUT)
    assert jnp.allclose(y16, y_ref, atol=1e-1, rtol=1e-1)

    print("KERNEL_OK")
</pallas_src>

<mosaic_0001>
module attributes {stable_mosaic.version = 11 : i64} {
  func.func @mlp_kernel(%arg0: i32, %arg1: memref<512x128xf32, #tpu.memory_space<vmem>>, %arg2: memref<3x128x128xf32, #tpu.memory_space<vmem>>, %arg3: memref<512x128xf32, #tpu.memory_space<vmem>>) attributes {dimension_semantics = [#tpu.dimension_semantics<parallel>], iteration_bounds = array<i64: 4>, scalar_prefetch = 0 : i64, scratch_operands = 0 : i64, tpu.core_type = #tpu.core_type<tc>, window_params = [{transform_indices = @transform_0, window_bounds = array<i64: 512, 128>}, {pipeline_mode = #tpu.pipeline_mode<synchronous>, transform_indices = @transform_1, window_bounds = array<i64: 3, 128, 128>}, {transform_indices = @transform_2, window_bounds = array<i64: 512, 128>}]} {
    %c0 = arith.constant 0 : index
    %c0_0 = arith.constant 0 : index
    %0 = vector.load %arg1[%c0, %c0_0] : memref<512x128xf32, #tpu.memory_space<vmem>>, vector<512x128xf32>
    %c0_1 = arith.constant 0 : index
    %c0_2 = arith.constant 0 : index
    %c0_3 = arith.constant 0 : index
    %1 = vector.load %arg2[%c0_1, %c0_2, %c0_3] : memref<3x128x128xf32, #tpu.memory_space<vmem>>, vector<1x128x128xf32>
    %2 = vector.shape_cast %1 : vector<1x128x128xf32> to vector<128x128xf32>
    %cst = arith.constant dense<0.000000e+00> : vector<512x128xf32>
    %3 = tpu.matmul %0, %2, %cst {dimension_numbers = #tpu.dot_dimension_numbers<[1], [0], [0], [1], [0, 0, 1, 1], [], []>} : vector<512x128xf32>, vector<128x128xf32>, vector<512x128xf32> -> vector<512x128xf32>
    %cst_4 = arith.constant 0.000000e+00 : f32
    %4 = vector.broadcast %cst_4 : f32 to vector<512x128xf32>
    %5 = arith.maximumf %3, %4 : vector<512x128xf32>
    %c1 = arith.constant 1 : index
    %c0_5 = arith.constant 0 : index
    %c0_6 = arith.constant 0 : index
    %6 = vector.load %arg2[%c1, %c0_5, %c0_6] : memref<3x128x128xf32, #tpu.memory_space<vmem>>, vector<1x128x128xf32>
    %7 = vector.shape_cast %6 : vector<1x128x128xf32> to vector<128x128xf32>
    %cst_7 = arith.constant dense<0.000000e+00> : vector<512x128xf32>
    %8 = tpu.matmul %5, %7, %cst_7 {dimension_numbers = #tpu.dot_dimension_numbers<[1], [0], [0], [1], [0, 0, 1, 1], [], []>} : vector<512x128xf32>, vector<128x128xf32>, vector<512x128xf32> -> vector<512x128xf32>
    %cst_8 = arith.constant 0.000000e+00 : f32
    %9 = vector.broadcast %cst_8 : f32 to vector<512x128xf32>
    %10 = arith.maximumf %8, %9 : vector<512x128xf32>
    %c2 = arith.constant 2 : index
    %c0_9 = arith.constant 0 : index
    %c0_10 = arith.constant 0 : index
    %11 = vector.load %arg2[%c2, %c0_9, %c0_10] : memref<3x128x128xf32, #tpu.memory_space<vmem>>, vector<1x128x128xf32>
    %12 = vector.shape_cast %11 : vector<1x128x128xf32> to vector<128x128xf32>
    %cst_11 = arith.constant dense<0.000000e+00> : vector<512x128xf32>
    %13 = tpu.matmul %10, %12, %cst_11 {dimension_numbers = #tpu.dot_dimension_numbers<[1], [0], [0], [1], [0, 0, 1, 1], [], []>} : vector<512x128xf32>, vector<128x128xf32>, vector<512x128xf32> -> vector<512x128xf32>
    %c0_12 = arith.constant 0 : index
    %c0_13 = arith.constant 0 : index
    %14 = vector.load %arg3[%c0_12, %c0_13] : memref<512x128xf32, #tpu.memory_space<vmem>>, vector<512x128xf32>
    tpu.vector_store %arg3[%c0_12, %c0_13], %13 {strides = array<i32>} : memref<512x128xf32, #tpu.memory_space<vmem>>, vector<512x128xf32>,
    return
  }
  func.func @transform_0(%arg0: i32) -> (i32, i32) {
    %c0_i32 = arith.constant 0 : i32
    %c0_i32_0 = arith.constant 0 : i32
    return %arg0, %c0_i32 : i32, i32
  }
  func.func @transform_1(%arg0: i32) -> (i32, i32, i32) {
    %c0_i32 = arith.constant 0 : i32
    %c0_i32_0 = arith.constant 0 : i32
    %c0_i32_1 = arith.constant 0 : i32
    %c0_i32_2 = arith.constant 0 : i32
    return %c0_i32, %c0_i32_0, %c0_i32_1 : i32, i32, i32
  }
  func.func @transform_2(%arg0: i32) -> (i32, i32) {
    %c0_i32 = arith.constant 0 : i32
    %c0_i32_0 = arith.constant 0 : i32
    return %arg0, %c0_i32 : i32, i32
  }
}

</mosaic_0001>

<llo_original>
// kernel: tpu_custom_call.1
$region0: #{tpu_custom_call.1}
  #allocation0 [shape = 'u32[]', space=smem, size = 0x4, offset = 0x4, fixed_abs, tag = 'smem constant byte address 0x4 - core index']
  #allocation1 [shape = 'u32[144,128]{1,0:T(1,128)}', space=vmem, size = 0x12000, scoped, tag = 'internal scratch']
  %s0 = inlined_call_operand.hbm [shape: f32[2048,128], index: 0, kind: input, shape index: {}]
  %s1 = inlined_call_operand.hbm [shape: f32[3,128,128], index: 1, kind: input, shape index: {}]
  %s2 = inlined_call_operand.hbm [shape: f32[2048,128], index: 2, kind: output, shape index: {}]
  %s3 = sld [smem:[#allocation0]]
  $region49: #{tpu_custom_call.1} parent=0
    _
  %s5 = ssub.s32 1, %s3
  %s6 = scalar_select 0, %s5, %s3
  $region1: #{tpu_custom_call.1} parent=0
    #allocation2 [shape = 'u8[524288]{0}', space=vmem, size = 0x80000, scoped, tag = 'input window, operand 0']
    #allocation3 [shape = 's32[2]{0}', space=sflag, size = 0x8, scoped, tag = 'scoped memory for tpu_custom_call.1']
    #allocation4 [shape = 's32[2]{0}', space=sflag, size = 0x8, scoped, tag = 'scoped memory for tpu_custom_call.1']
    #allocation5 [shape = 'u8[196608]{0}', space=vmem, size = 0x30000, scoped, tag = 'input window, operand 1, single buffered']
    #allocation6 [shape = 's32[1]{0}', space=sflag, size = 0x4, scoped, tag = 'scoped memory for tpu_custom_call.1']
    #allocation7 [shape = 'u8[524288]{0}', space=vmem, size = 0x80000, scoped, tag = 'output window, operand 0']
    %7 = vsyncpa [#allocation3], 0
    %s8 = scalar_lea.sflag [#allocation3], 1
    %9 = vsyncpa %s8, 0
    %10 = vsyncpa [#allocation6], 0
    %11 = vsyncpa [#allocation4], 0
    %s12 = scalar_lea.sflag [#allocation4], 1
    %13 = vsyncpa %s12, 0
    loop: start=0, step=1, limit=6
    $region2: #{tpu_custom_call.1} parent=1 // loop_pre_header
      _
    $region3: #{tpu_custom_call.1} parent=1 // loop_header
      %s15 = sphi 0, %s19
      %p16 = scmp.ge.s32.totalorder %s15, 6
      %s25 = sphi 0, %s27
      %s28 = sphi 0, %s25
      %s29 = sphi 0, %s28
      %s45 = sphi 0, %s29
      %s49 = sphi 0, %s49
      %s51 = sphi 0, %s49
      %s52 = sphi 0, %s51
      %s66 = sphi 0, %s52
      %s72 = sphi 0, %s74
      %s75 = sphi 0, %s72
      %s76 = sphi 0, %s75
      %s92 = sphi 0, %s76
    $region4: #{tpu_custom_call.1} parent=1 // loop_header_branch
      %18 = sbr.rel (%p16) target = $region8
    $region5: #{tpu_custom_call.1} parent=1 // loop_body
      %s20 = ssub.s32 %s15, 1
      %s21 = ssub.s32 %s15, 2
      %s22 = sadd.s32 %s15, 1
      %s23 = ssub.s32 %s15, %s22
      %p24 = scmp.eq.s32.totalorder %s23, 0
      %s26 = sadd.s32 %s25, 1
      %s27 = scalar_select %p24, %s25, %s26
      %p30 = pneg %p24
      %p31 = scmp.eq.s32.totalorder %s15, 3
      %p32 = por %p30, %p31
      %p33 = scmp.ne.s32.totalorder %s25, %s28
      %p34 = scmp.eq.s32.totalorder %s15, 0
      %p35 = por %p33, %p34
      %p36 = scmp.ne.s32.totalorder %s25, %s28
      %p37 = scmp.eq.s32.totalorder %s20, 3
      %p38 = por %p36, %p37
      %p39 = scmp.ne.s32.totalorder %s28, %s29
      %p40 = scmp.eq.s32.totalorder %s20, 0
      %p41 = por %p39, %p40
      %p42 = scmp.ne.s32.totalorder %s28, %s29
      %p43 = scmp.eq.s32.totalorder %s21, 3
      %p44 = por %p42, %p43
      %p46 = scmp.ne.s32.totalorder %s29, %s45
      %p47 = scmp.eq.s32.totalorder %s21, 0
      %p48 = por %p46, %p47
      %s50 = sadd.s32 %s49, 1
      %p53 = scmp.eq.s32.totalorder %s15, 3
      %p54 = scmp.ne.s32.totalorder %s49, %s51
      %p55 = scmp.eq.s32.totalorder %s15, 0
      %p56 = por %p54, %p55
      %p57 = scmp.ne.s32.totalorder %s49, %s51
      %p58 = scmp.eq.s32.totalorder %s20, 3
      %p59 = por %p57, %p58
      %p60 = scmp.ne.s32.totalorder %s51, %s52
      %p61 = scmp.eq.s32.totalorder %s20, 0
      %p62 = por %p60, %p61
      %p63 = scmp.ne.s32.totalorder %s51, %s52
      %p64 = scmp.eq.s32.totalorder %s21, 3
      %p65 = por %p63, %p64
      %p67 = scmp.ne.s32.totalorder %s52, %s66
      %p68 = scmp.eq.s32.totalorder %s21, 0
      %p69 = por %p67, %p68
      %s70 = ssub.s32 %s15, %s22
      %p71 = scmp.eq.s32.totalorder %s70, 0
      %s73 = sadd.s32 %s72, 1
      %s74 = scalar_select %p71, %s72, %s73
      %p77 = pneg %p71
      %p78 = scmp.eq.s32.totalorder %s15, 3
      %p79 = por %p77, %p78
      %p80 = scmp.ne.s32.totalorder %s72, %s75
      %p81 = scmp.eq.s32.totalorder %s15, 0
      %p82 = por %p80, %p81
      %p83 = scmp.ne.s32.totalorder %s72, %s75
      %p84 = scmp.eq.s32.totalorder %s20, 3
      %p85 = por %p83, %p84
      %p86 = scmp.ne.s32.totalorder %s75, %s76
      %p87 = scmp.eq.s32.totalorder %s20, 0
      %p88 = por %p86, %p87
      %p89 = scmp.ne.s32.totalorder %s75, %s76
      %p90 = scmp.eq.s32.totalorder %s21, 3
      %p91 = por %p89, %p90
      %p93 = scmp.ne.s32.totalorder %s76, %s92
      %p94 = scmp.eq.s32.totalorder %s21, 0
      %p95 = por %p93, %p94
      %p96 = scmp.le.s32.totalorder 1, %s15
      %p97 = scmp.lt.s32.totalorder %s15, 5
      %p98 = pnand %p96, %p97
      %p99 = pneg %p98
      // Predicated region
      $region9: #{tpu_custom_call.1} parent=5 // pred_check
        _
      $region10: #{tpu_custom_call.1} parent=5 // pred_check_branch
        %101 = sbr.rel (%p98) target = $region12
      $region11: #{tpu_custom_call.1} parent=5 // pred_region
        %s102 = ssub.s32 %s15, 1
        // Predicated region
        $region13: #{tpu_custom_call.1} parent=11 // pred_check
          %p103 = pneg %p62
        $region14: #{tpu_custom_call.1} parent=11 // pred_check_branch
          %105 = sbr.rel (%p103) target = $region16
        $region15: #{tpu_custom_call.1} parent=11 // pred_region
          %s107 = ssub.s32 6144, 6144
          %108 = vsyncadd [#allocation6], %s107
          %s109 = sshll.u32 [#allocation5], 4
          %s110 = int_to_ptr.vmem [resolvable:$true] %s109
          %115 = dma.hbm_to_vmem [thread:$0]  %s1, 6144, %s110, [#allocation6], 128, 128, 8
        $region16: #{tpu_custom_call.1} parent=11 // pred_fallthru
          _
      $region12: #{tpu_custom_call.1} parent=5 // pred_fallthru
        _
      %p116 = scmp.lt.s32.totalorder %s15, 4
      // Predicated region
      $region17: #{tpu_custom_call.1} parent=5 // pred_check
        %p117 = pneg %p116
      $region18: #{tpu_custom_call.1} parent=5 // pred_check_branch
        %119 = sbr.rel (%p117) target = $region20
      $region19: #{tpu_custom_call.1} parent=5 // pred_region
        // Predicated region
        $region21: #{tpu_custom_call.1} parent=19 // pred_check
          %p120 = pneg %p35
        $region22: #{tpu_custom_call.1} parent=19 // pred_check_branch
          %122 = sbr.rel (%p120) target = $region24
        $region23: #{tpu_custom_call.1} parent=19 // pred_region
          %s123 = sand.u32 %s25, 1
          %s124 = scalar_lea.sflag [#allocation3], %s123
          %s125 = sand.u32 %s25, 1
          %s126 = smul.addr %s125, 512
          %s127 = scalar_lea.vmem [#allocation2], %s126
          %s128 = smul.u32 64, %s15
          %s130 = ssub.s32 8192, 8192
          %131 = vsyncadd %s124, %s130
          %s132 = smul.addr %s128, 128
          %s133 = scalar_lea.hbm %s0, %s132
          %s134 = sshll.u32 %s127, 4
          %s135 = int_to_ptr.vmem [resolvable:$true] %s134
          %140 = dma.hbm_to_vmem [thread:$0]  %s133, 8192, %s135, %s124, 128, 128, 8
        $region24: #{tpu_custom_call.1} parent=19 // pred_fallthru
          _
      $region20: #{tpu_custom_call.1} parent=5 // pred_fallthru
        _
      %p141 = scmp.le.s32.totalorder 1, %s15
      %p142 = scmp.lt.s32.totalorder %s15, 5
      %p143 = pnand %p141, %p142
      %p144 = pneg %p143
      // Predicated region
      $region25: #{tpu_custom_call.1} parent=5 // pred_check
        _
      $region26: #{tpu_custom_call.1} parent=5 // pred_check_branch
        %146 = sbr.rel (%p143) target = $region28
      $region27: #{tpu_custom_call.1} parent=5 // pred_region
        %s147 = ssub.s32 %s15, 1
        %s148 = sand.u32 %s28, 1
        %s149 = scalar_lea.sflag [#allocation3], %s148
        %s150 = sand.u32 %s28, 1
        %s151 = smul.addr %s150, 512
        %s152 = scalar_lea.vmem [#allocation2], %s151
        // Predicated region
        $region29: #{tpu_custom_call.1} parent=27 // pred_check
          %p153 = pneg %p41
        $region30: #{tpu_custom_call.1} parent=27 // pred_check_branch
          %155 = sbr.rel (%p153) target = $region32
        $region31: #{tpu_custom_call.1} parent=27 // pred_region
          %156 = dma.done %s149, 8192
        $region32: #{tpu_custom_call.1} parent=27 // pred_fallthru
          _
        // Predicated region
        $region33: #{tpu_custom_call.1} parent=27 // pred_check
          %p157 = pneg %p62
        $region34: #{tpu_custom_call.1} parent=27 // pred_check_branch
          %159 = sbr.rel (%p157) target = $region36
        $region35: #{tpu_custom_call.1} parent=27 // pred_region
          %160 = dma.done [#allocation6], 6144
        $region36: #{tpu_custom_call.1} parent=27 // pred_fallthru
          _
        %s161 = sand.u32 %s28, 1
        %s162 = scalar_lea.sflag [#allocation3], %s161
        %s163 = sand.u32 %s28, 1
        %s164 = smul.addr %s163, 512
        %s165 = scalar_lea.vmem [#allocation2], %s164
        %p166 = pneg %p41
        %p167 = pneg %p38
        %p168 = pneg %p62
        %p169 = pneg %p59
        %p170 = pneg %p88
        %p171 = pneg %p85
        %s172 = sand.u32 %s75, 1
        %s173 = scalar_lea.sflag [#allocation4], %s172
        %s174 = sand.u32 %s75, 1
        %s175 = smul.addr %s174, 512
        %s176 = scalar_lea.vmem [#allocation7], %s175
        %s177 = smul.u32 64, %s20
        %s178 = smul.u32 64, %s20
        %v179 = vld [vmem:[%s152] sm:$0xff]
        %v180 = vld [vmem:[%s152 + $0x8] sm:$0xff]
        %v181 = vld [vmem:[%s152 + $0x10] sm:$0xff]
        %v182 = vld [vmem:[%s152 + $0x18] sm:$0xff]
        %v183 = vld [vmem:[%s152 + $0x20] sm:$0xff]
        %v184 = vld [vmem:[%s152 + $0x28] sm:$0xff]
        %v185 = vld [vmem:[%s152 + $0x30] sm:$0xff]
        %v186 = vld [vmem:[%s152 + $0x38] sm:$0xff]
        %v187 = vld [vmem:[%s152 + $0x40] sm:$0xff]
        %v188 = vld [vmem:[%s152 + $0x48] sm:$0xff]
        %v189 = vld [vmem:[%s152 + $0x50] sm:$0xff]
        %v190 = vld [vmem:[%s152 + $0x58] sm:$0xff]
        %v191 = vld [vmem:[%s152 + $0x60] sm:$0xff]
        %v192 = vld [vmem:[%s152 + $0x68] sm:$0xff]
        %v193 = vld [vmem:[%s152 + $0x70] sm:$0xff]
        %v194 = vld [vmem:[%s152 + $0x78] sm:$0xff]
        %v195 = vld [vmem:[%s152 + $0x80] sm:$0xff]
        %v196 = vld [vmem:[%s152 + $0x88] sm:$0xff]
        %v197 = vld [vmem:[%s152 + $0x90] sm:$0xff]
        %v198 = vld [vmem:[%s152 + $0x98] sm:$0xff]
        %v199 = vld [vmem:[%s152 + $0xa0] sm:$0xff]
        %v200 = vld [vmem:[%s152 + $0xa8] sm:$0xff]
        %v201 = vld [vmem:[%s152 + $0xb0] sm:$0xff]
        %v202 = vld [vmem:[%s152 + $0xb8] sm:$0xff]
        %v203 = vld [vmem:[%s152 + $0xc0] sm:$0xff]
        %v204 = vld [vmem:[%s152 + $0xc8] sm:$0xff]
        %v205 = vld [vmem:[%s152 + $0xd0] sm:$0xff]
        %v206 = vld [vmem:[%s152 + $0xd8] sm:$0xff]
        %v207 = vld [vmem:[%s152 + $0xe0] sm:$0xff]
        %v208 = vld [vmem:[%s152 + $0xe8] sm:$0xff]
        %v209 = vld [vmem:[%s152 + $0xf0] sm:$0xff]
        %v210 = vld [vmem:[%s152 + $0xf8] sm:$0xff]
        %v211 = vld [vmem:[%s152 + $0x100] sm:$0xff]
        %v212 = vld [vmem:[%s152 + $0x108] sm:$0xff]
        %v213 = vld [vmem:[%s152 + $0x110] sm:$0xff]
        %v214 = vld [vmem:[%s152 + $0x118] sm:$0xff]
        %v215 = vld [vmem:[%s152 + $0x120] sm:$0xff]
        %v216 = vld [vmem:[%s152 + $0x128] sm:$0xff]
        %v217 = vld [vmem:[%s152 + $0x130] sm:$0xff]
        %v218 = vld [vmem:[%s152 + $0x138] sm:$0xff]
        %v219 = vld [vmem:[%s152 + $0x140] sm:$0xff]
        %v220 = vld [vmem:[%s152 + $0x148] sm:$0xff]
        %v221 = vld [vmem:[%s152 + $0x150] sm:$0xff]
        %v222 = vld [vmem:[%s152 + $0x158] sm:$0xff]
        %v223 = vld [vmem:[%s152 + $0x160] sm:$0xff]
        %v224 = vld [vmem:[%s152 + $0x168] sm:$0xff]
        %v225 = vld [vmem:[%s152 + $0x170] sm:$0xff]
        %v226 = vld [vmem:[%s152 + $0x178] sm:$0xff]
        %v227 = vld [vmem:[%s152 + $0x180] sm:$0xff]
        %v228 = vld [vmem:[%s152 + $0x188] sm:$0xff]
        %v229 = vld [vmem:[%s152 + $0x190] sm:$0xff]
        %v230 = vld [vmem:[%s152 + $0x198] sm:$0xff]
        %v231 = vld [vmem:[%s152 + $0x1a0] sm:$0xff]
        %v232 = vld [vmem:[%s152 + $0x1a8] sm:$0xff]
        %v233 = vld [vmem:[%s152 + $0x1b0] sm:$0xff]
        %v234 = vld [vmem:[%s152 + $0x1b8] sm:$0xff]
        %v235 = vld [vmem:[%s152 + $0x1c0] sm:$0xff]
        %v236 = vld [vmem:[%s152 + $0x1c8] sm:$0xff]
        %v237 = vld [vmem:[%s152 + $0x1d0] sm:$0xff]
        %v238 = vld [vmem:[%s152 + $0x1d8] sm:$0xff]
        %v239 = vld [vmem:[%s152 + $0x1e0] sm:$0xff]
        %v240 = vld [vmem:[%s152 + $0x1e8] sm:$0xff]
        %v241 = vld [vmem:[%s152 + $0x1f0] sm:$0xff]
        %v242 = vld [vmem:[%s152 + $0x1f8] sm:$0xff]
        %v243 = vld [vmem:[#allocation5] sm:$0xff]
        %v244 = vld [vmem:[#allocation5 + $0x8] sm:$0xff]
        %v245 = vld [vmem:[#allocation5 + $0x10] sm:$0xff]
        %v246 = vld [vmem:[#allocation5 + $0x18] sm:$0xff]
        %v247 = vld [vmem:[#allocation5 + $0x20] sm:$0xff]
        %v248 = vld [vmem:[#allocation5 + $0x28] sm:$0xff]
        %v249 = vld [vmem:[#allocation5 + $0x30] sm:$0xff]
        %v250 = vld [vmem:[#allocation5 + $0x38] sm:$0xff]
        %v251 = vld [vmem:[#allocation5 + $0x40] sm:$0xff]
        %v252 = vld [vmem:[#allocation5 + $0x48] sm:$0xff]
        %v253 = vld [vmem:[#allocation5 + $0x50] sm:$0xff]
        %v254 = vld [vmem:[#allocation5 + $0x58] sm:$0xff]
        %v255 = vld [vmem:[#allocation5 + $0x60] sm:$0xff]
        %v256 = vld [vmem:[#allocation5 + $0x68] sm:$0xff]
        %v257 = vld [vmem:[#allocation5 + $0x70] sm:$0xff]
        %v258 = vld [vmem:[#allocation5 + $0x78] sm:$0xff]
        %259 = vmatprep.subr.mxu0 0.0
        %260 = vmatpush1.msra.mxu0 %v243
        %261 = vmatprep.subr.mxu0 0.0
        %262 = vmatpush1.msra.mxu0 %v244
        %263 = vmatprep.subr.mxu0 0.0
        %264 = vmatpush1.msra.mxu0 %v245
        %265 = vmatprep.subr.mxu0 0.0
        %266 = vmatpush1.msra.mxu0 %v246
        %267 = vmatprep.subr.mxu0 0.0
        %268 = vmatpush1.msra.mxu0 %v247
        %269 = vmatprep.subr.mxu0 0.0
        %270 = vmatpush1.msra.mxu0 %v248
        %271 = vmatprep.subr.mxu0 0.0
        %272 = vmatpush1.msra.mxu0 %v249
        %273 = vmatprep.subr.mxu0 0.0
        %274 = vmatpush1.msra.mxu0 %v250
        %275 = vmatprep.subr.mxu0 0.0
        %276 = vmatpush1.msra.mxu0 %v251
        %277 = vmatprep.subr.mxu0 0.0
        %278 = vmatpush1.msra.mxu0 %v252
        %279 = vmatprep.subr.mxu0 0.0
        %280 = vmatpush1.msra.mxu0 %v253
        %281 = vmatprep.subr.mxu0 0.0
        %282 = vmatpush1.msra.mxu0 %v254
        %283 = vmatprep.subr.mxu0 0.0
        %284 = vmatpush1.msra.mxu0 %v255
        %285 = vmatprep.subr.mxu0 0.0
        %286 = vmatpush1.msra.mxu0 %v256
        %287 = vmatprep.subr.mxu0 0.0
        %288 = vmatpush1.msra.mxu0 %v257
        %289 = vmatprep.subr.mxu0 0.0
        %290 = vmatpush1.msra.mxu0 %v258
        %291 = vmatprep.subr.mxu0 0.0
        %292 = vmatpush1.msra.mxu0 0.0
        %293 = vmatprep.subr.mxu0 0.0
        %294 = vmatpush1.msra.mxu0 0.0
        %295 = vmatprep.subr.mxu0 0.0
        %296 = vmatpush1.msra.mxu0 0.0
        %297 = vmatprep.subr.mxu0 0.0
        %298 = vmatpush1.msra.mxu0 0.0
        %299 = vmatprep.subr.mxu0 0.0
        %300 = vmatpush1.msra.mxu0 0.0
        %301 = vmatprep.subr.mxu0 0.0
        %302 = vmatpush1.msra.mxu0 0.0
        %303 = vmatprep.subr.mxu0 0.0
        %304 = vmatpush1.msra.mxu0 0.0
        %305 = vmatprep.subr.mxu0 0.0
        %306 = vmatpush1.msra.mxu0 0.0
        %307 = vmatprep.subr.mxu0 0.0
        %308 = vmatpush1.msra.mxu0 0.0
        %309 = vmatprep.subr.mxu0 0.0
        %310 = vmatpush1.msra.mxu0 0.0
        %311 = vmatprep.subr.mxu0 0.0
        %312 = vmatpush1.msra.mxu0 0.0
        %313 = vmatprep.subr.mxu0 0.0
        %314 = vmatpush1.msra.mxu0 0.0
        %315 = vmatprep.subr.mxu0 0.0
        %316 = vmatpush1.msra.mxu0 0.0
        %317 = vmatprep.subr.mxu0 0.0
        %318 = vmatpush1.msra.mxu0 0.0
        %319 = vmatprep.subr.mxu0 0.0
        %320 = vmatpush1.msra.mxu0 0.0
        %321 = vmatprep.subr.mxu0 0.0
        %322 = vmatpush1.msra.mxu0 0.0
        %323 = vmatprep.mubr.f32.mxu0 0.0
        %324 = vmatmul.mubr.f32.gmra.mrb[0].mxu0 %v179
        %v325 = vpop.f32.mrb[0].mxu0
        %v326 = vadd.f32 0.0, %v325
        %v327 = vpop.f32.mrb[0].mxu0
        %328 = vmatprep.mubr.f32.mxu0 0.0
        %329 = vmatmul.mubr.f32.gmra.mrb[0].mxu0 %v180
        %v330 = vpop.f32.mrb[0].mxu0
        %v331 = vadd.f32 0.0, %v330
        %v332 = vpop.f32.mrb[0].mxu0
        %333 = vmatprep.mubr.f32.mxu0 0.0
        %334 = vmatmul.mubr.f32.gmra.mrb[0].mxu0 %v181
        %v335 = vpop.f32.mrb[0].mxu0
        %v336 = vadd.f32 0.0, %v335
        %v337 = vpop.f32.mrb[0].mxu0
        %338 = vmatprep.mubr.f32.mxu0 0.0
        %339 = vmatmul.mubr.f32.gmra.mrb[0].mxu0 %v182
        %v340 = vpop.f32.mrb[0].mxu0
        %v341 = vadd.f32 0.0, %v340
        %v342 = vpop.f32.mrb[0].mxu0
        %343 = vmatprep.mubr.f32.mxu0 0.0
        %344 = vmatmul.mubr.f32.gmra.mrb[0].mxu0 %v183
        %v345 = vpop.f32.mrb[0].mxu0
        %v346 = vadd.f32 0.0, %v345
        %v347 = vpop.f32.mrb[0].mxu0
        %348 = vmatprep.mubr.f32.mxu0 0.0
        %349 = vmatmul.mubr.f32.gmra.mrb[0].mxu0 %v184
        %v350 = vpop.f32.mrb[0].mxu0
        %v351 = vadd.f32 0.0, %v350
        %v352 = vpop.f32.mrb[0].mxu0
        %353 = vmatprep.mubr.f32.mxu0 0.0
        %354 = vmatmul.mubr.f32.gmra.mrb[0].mxu0 %v185
        %v355 = vpop.f32.mrb[0].mxu0
        %v356 = vadd.f32 0.0, %v355
        %v357 = vpop.f32.mrb[0].mxu0
        %358 = vmatprep.mubr.f32.mxu0 0.0
        %359 = vmatmul.mubr.f32.gmra.mrb[0].mxu0 %v186
        %v360 = vpop.f32.mrb[0].mxu0
        %v361 = vadd.f32 0.0, %v360
        %v362 = vpop.f32.mrb[0].mxu0
        %363 = vmatprep.mubr.f32.mxu0 0.0
        %364 = vmatmul.mubr.f32.gmra.mrb[0].mxu0 %v187
        %v365 = vpop.f32.mrb[0].mxu0
        %v366 = vadd.f32 0.0, %v365
        %v367 = vpop.f32.mrb[0].mxu0
        %368 = vmatprep.mubr.f32.mxu0 0.0
        %369 = vmatmul.mubr.f32.gmra.mrb[0].mxu0 %v188
        %v370 = vpop.f32.mrb[0].mxu0
        %v371 = vadd.f32 0.0, %v370
        %v372 = vpop.f32.mrb[0].mxu0
        %373 = vmatprep.mubr.f32.mxu0 0.0
        %374 = vmatmul.mubr.f32.gmra.mrb[0].mxu0 %v189
        %v375 = vpop.f32.mrb[0].mxu0
        %v376 = vadd.f32 0.0, %v375
        %v377 = vpop.f32.mrb[0].mxu0
        %378 = vmatprep.mubr.f32.mxu0 0.0
        %379 = vmatmul.mubr.f32.gmra.mrb[0].mxu0 %v190
        %v380 = vpop.f32.mrb[0].mxu0
        %v381 = vadd.f32 0.0, %v380
        %v382 = vpop.f32.mrb[0].mxu0
        %383 = vmatprep.mubr.f32.mxu0 0.0
        %384 = vmatmul.mubr.f32.gmra.mrb[0].mxu0 %v191
        %v385 = vpop.f32.mrb[0].mxu0
        %v386 = vadd.f32 0.0, %v385
        %v387 = vpop.f32.mrb[0].mxu0
        %388 = vmatprep.mubr.f32.mxu0 0.0
        %389 = vmatmul.mubr.f32.gmra.mrb[0].mxu0 %v192
        %v390 = vpop.f32.mrb[0].mxu0
        %v391 = vadd.f32 0.0, %v390
        %v392 = vpop.f32.mrb[0].mxu0
        %393 = vmatprep.mubr.f32.mxu0 0.0
        %394 = vmatmul.mubr.f32.gmra.mrb[0].mxu0 %v193
        %v395 = vpop.f32.mrb[0].mxu0
        %v396 = vadd.f32 0.0, %v395
        %v397 = vpop.f32.mrb[0].mxu0
        %398 = vmatprep.mubr.f32.mxu0 0.0
        %399 = vmatmul.mubr.f32.gmra.mrb[0].mxu0 %v194
        %v400 = vpop.f32.mrb[0].mxu0
        %v401 = vadd.f32 0.0, %v400
        %v402 = vpop.f32.mrb[0].mxu0
        %403 = vmatprep.mubr.f32.mxu0 0.0
        %404 = vmatmul.mubr.f32.gmra.mrb[0].mxu0 %v195
        %v405 = vpop.f32.mrb[0].mxu0
        %v406 = vadd.f32 0.0, %v405
        %v407 = vpop.f32.mrb[0].mxu0
        %408 = vmatprep.mubr.f32.mxu0 0.0
        %409 = vmatmul.mubr.f32.gmra.mrb[0].mxu0 %v196
        %v410 = vpop.f32.mrb[0].mxu0
        %v411 = vadd.f32 0.0, %v410
        %v412 = vpop.f32.mrb[0].mxu0
        %413 = vmatprep.mubr.f32.mxu0 0.0
        %414 = vmatmul.mubr.f32.gmra.mrb[0].mxu0 %v197
        %v415 = vpop.f32.mrb[0].mxu0
        %v416 = vadd.f32 0.0, %v415
        %v417 = vpop.f32.mrb[0].mxu0
        %418 = vmatprep.mubr.f32.mxu0 0.0
        %419 = vmatmul.mubr.f32.gmra.mrb[0].mxu0 %v198
        %v420 = vpop.f32.mrb[0].mxu0
        %v421 = vadd.f32 0.0, %v420
        %v422 = vpop.f32.mrb[0].mxu0
        %423 = vmatprep.mubr.f32.mxu0 0.0
        %424 = vmatmul.mubr.f32.gmra.mrb[0].mxu0 %v199
        %v425 = vpop.f32.mrb[0].mxu0
        %v426 = vadd.f32 0.0, %v425
        %v427 = vpop.f32.mrb[0].mxu0
        %428 = vmatprep.mubr.f32.mxu0 0.0
        %429 = vmatmul.mubr.f32.gmra.mrb[0].mxu0 %v200
        %v430 = vpop.f32.mrb[0].mxu0
        %v431 = vadd.f32 0.0, %v430
        %v432 = vpop.f32.mrb[0].mxu0
        %433 = vmatprep.mubr.f32.mxu0 0.0
        %434 = vmatmul.mubr.f32.gmra.mrb[0].mxu0 %v201
        %v435 = vpop.f32.mrb[0].mxu0
        %v436 = vadd.f32 0.0, %v435
        %v437 = vpop.f32.mrb[0].mxu0
        %438 = vmatprep.mubr.f32.mxu0 0.0
        %439 = vmatmul.mubr.f32.gmra.mrb[0].mxu0 %v202
        %v440 = vpop.f32.mrb[0].mxu0
        %v441 = vadd.f32 0.0, %v440
        %v442 = vpop.f32.mrb[0].mxu0
        %443 = vmatprep.mubr.f32.mxu0 0.0
        %444 = vmatmul.mubr.f32.gmra.mrb[0].mxu0 %v203
        %v445 = vpop.f32.mrb[0].mxu0
        %v446 = vadd.f32 0.0, %v445
        %v447 = vpop.f32.mrb[0].mxu0
        %448 = vmatprep.mubr.f32.mxu0 0.0
        %449 = vmatmul.mubr.f32.gmra.mrb[0].mxu0 %v204
        %v450 = vpop.f32.mrb[0].mxu0
        %v451 = vadd.f32 0.0, %v450
        %v452 = vpop.f32.mrb[0].mxu0
        %453 = vmatprep.mubr.f32.mxu0 0.0
        %454 = vmatmul.mubr.f32.gmra.mrb[0].mxu0 %v205
        %v455 = vpop.f32.mrb[0].mxu0
        %v456 = vadd.f32 0.0, %v455
        %v457 = vpop.f32.mrb[0].mxu0
        %458 = vmatprep.mubr.f32.mxu0 0.0
        %459 = vmatmul.mubr.f32.gmra.mrb[0].mxu0 %v206
        %v460 = vpop.f32.mrb[0].mxu0
        %v461 = vadd.f32 0.0, %v460
        %v462 = vpop.f32.mrb[0].mxu0
        %463 = vmatprep.mubr.f32.mxu0 0.0
        %464 = vmatmul.mubr.f32.gmra.mrb[0].mxu0 %v207
        %v465 = vpop.f32.mrb[0].mxu0
        %v466 = vadd.f32 0.0, %v465
        %v467 = vpop.f32.mrb[0].mxu0
        %468 = vmatprep.mubr.f32.mxu0 0.0
        %469 = vmatmul.mubr.f32.gmra.mrb[0].mxu0 %v208
        %v470 = vpop.f32.mrb[0].mxu0
        %v471 = vadd.f32 0.0, %v470
        %v472 = vpop.f32.mrb[0].mxu0
        %473 = vmatprep.mubr.f32.mxu0 0.0
        %474 = vmatmul.mubr.f32.gmra.mrb[0].mxu0 %v209
        %v475 = vpop.f32.mrb[0].mxu0
        %v476 = vadd.f32 0.0, %v475
        %v477 = vpop.f32.mrb[0].mxu0
        %478 = vmatprep.mubr.f32.mxu0 0.0
        %479 = vmatmul.mubr.f32.gmra.mrb[0].mxu0 %v210
        %v480 = vpop.f32.mrb[0].mxu0
        %v481 = vadd.f32 0.0, %v480
        %v482 = vpop.f32.mrb[0].mxu0
        %483 = vmatprep.mubr.f32.mxu0 0.0
        %484 = vmatmul.mubr.f32.gmra.mrb[0].mxu0 %v211
        %v485 = vpop.f32.mrb[0].mxu0
        %v486 = vadd.f32 0.0, %v485
        %v487 = vpop.f32.mrb[0].mxu0
        %488 = vmatprep.mubr.f32.mxu0 0.0
        %489 = vmatmul.mubr.f32.gmra.mrb[0].mxu0 %v212
        %v490 = vpop.f32.mrb[0].mxu0
        %v491 = vadd.f32 0.0, %v490
        %v492 = vpop.f32.mrb[0].mxu0
        %493 = vmatprep.mubr.f32.mxu0 0.0
        %494 = vmatmul.mubr.f32.gmra.mrb[0].mxu0 %v213
        %v495 = vpop.f32.mrb[0].mxu0
        %v496 = vadd.f32 0.0, %v495
        %v497 = vpop.f32.mrb[0].mxu0
        %498 = vmatprep.mubr.f32.mxu0 0.0
        %499 = vmatmul.mubr.f32.gmra.mrb[0].mxu0 %v214
        %v500 = vpop.f32.mrb[0].mxu0
        %v501 = vadd.f32 0.0, %v500
        %v502 = vpop.f32.mrb[0].mxu0
        %503 = vmatprep.mubr.f32.mxu0 0.0
        %504 = vmatmul.mubr.f32.gmra.mrb[0].mxu0 %v215
        %v505 = vpop.f32.mrb[0].mxu0
        %v506 = vadd.f32 0.0, %v505
        %v507 = vpop.f32.mrb[0].mxu0
        %508 = vmatprep.mubr.f32.mxu0 0.0
        %509 = vmatmul.mubr.f32.gmra.mrb[0].mxu0 %v216
        %v510 = vpop.f32.mrb[0].mxu0
        %v511 = vadd.f32 0.0, %v510
        %v512 = vpop.f32.mrb[0].mxu0
        %513 = vmatprep.mubr.f32.mxu0 0.0
        %514 = vmatmul.mubr.f32.gmra.mrb[0].mxu0 %v217
        %v515 = vpop.f32.mrb[0].mxu0
        %v516 = vadd.f32 0.0, %v515
        %v517 = vpop.f32.mrb[0].mxu0
        %518 = vmatprep.mubr.f32.mxu0 0.0
        %519 = vmatmul.mubr.f32.gmra.mrb[0].mxu0 %v218
        %v520 = vpop.f32.mrb[0].mxu0
        %v521 = vadd.f32 0.0, %v520
        %v522 = vpop.f32.mrb[0].mxu0
        %523 = vmatprep.mubr.f32.mxu0 0.0
        %524 = vmatmul.mubr.f32.gmra.mrb[0].mxu0 %v219
        %v525 = vpop.f32.mrb[0].mxu0
        %v526 = vadd.f32 0.0, %v525
        %v527 = vpop.f32.mrb[0].mxu0
        %528 = vmatprep.mubr.f32.mxu0 0.0
        %529 = vmatmul.mubr.f32.gmra.mrb[0].mxu0 %v220
        %v530 = vpop.f32.mrb[0].mxu0
        %v531 = vadd.f32 0.0, %v530
        %v532 = vpop.f32.mrb[0].mxu0
        %533 = vmatprep.mubr.f32.mxu0 0.0
        %534 = vmatmul.mubr.f32.gmra.mrb[0].mxu0 %v221
        %v535 = vpop.f32.mrb[0].mxu0
        %v536 = vadd.f32 0.0, %v535
        %v537 = vpop.f32.mrb[0].mxu0
        %538 = vmatprep.mubr.f32.mxu0 0.0
        %539 = vmatmul.mubr.f32.gmra.mrb[0].mxu0 %v222
        %v540 = vpop.f32.mrb[0].mxu0
        %v541 = vadd.f32 0.0, %v540
        %v542 = vpop.f32.mrb[0].mxu0
        %543 = vmatprep.mubr.f32.mxu0 0.0
        %544 = vmatmul.mubr.f32.gmra.mrb[0].mxu0 %v223
        %v545 = vpop.f32.mrb[0].mxu0
        %v546 = vadd.f32 0.0, %v545
        %v547 = vpop.f32.mrb[0].mxu0
        %548 = vmatprep.mubr.f32.mxu0 0.0
        %549 = vmatmul.mubr.f32.gmra.mrb[0].mxu0 %v224
        %v550 = vpop.f32.mrb[0].mxu0
        %v551 = vadd.f32 0.0, %v550
        %v552 = vpop.f32.mrb[0].mxu0
        %553 = vmatprep.mubr.f32.mxu0 0.0
        %554 = vmatmul.mubr.f32.gmra.mrb[0].mxu0 %v225
        %v555 = vpop.f32.mrb[0].mxu0
        %v556 = vadd.f32 0.0, %v555
        %v557 = vpop.f32.mrb[0].mxu0
        %558 = vmatprep.mubr.f32.mxu0 0.0
        %559 = vmatmul.mubr.f32.gmra.mrb[0].mxu0 %v226
        %v560 = vpop.f32.mrb[0].mxu0
        %v561 = vadd.f32 0.0, %v560
        %v562 = vpop.f32.mrb[0].mxu0
        %563 = vmatprep.mubr.f32.mxu0 0.0
        %564 = vmatmul.mubr.f32.gmra.mrb[0].mxu0 %v227
        %v565 = vpop.f32.mrb[0].mxu0
        %v566 = vadd.f32 0.0, %v565
        %v567 = vpop.f32.mrb[0].mxu0
        %568 = vmatprep.mubr.f32.mxu0 0.0
        %569 = vmatmul.mubr.f32.gmra.mrb[0].mxu0 %v228
        %v570 = vpop.f32.mrb[0].mxu0
        %v571 = vadd.f32 0.0, %v570
        %v572 = vpop.f32.mrb[0].mxu0
        %573 = vmatprep.mubr.f32.mxu0 0.0
        %574 = vmatmul.mubr.f32.gmra.mrb[0].mxu0 %v229
        %v575 = vpop.f32.mrb[0].mxu0
        %v576 = vadd.f32 0.0, %v575
        %v577 = vpop.f32.mrb[0].mxu0
        %578 = vmatprep.mubr.f32.mxu0 0.0
        %579 = vmatmul.mubr.f32.gmra.mrb[0].mxu0 %v230
        %v580 = vpop.f32.mrb[0].mxu0
        %v581 = vadd.f32 0.0, %v580
        %v582 = vpop.f32.mrb[0].mxu0
        %583 = vmatprep.mubr.f32.mxu0 0.0
        %584 = vmatmul.mubr.f32.gmra.mrb[0].mxu0 %v231
        %v585 = vpop.f32.mrb[0].mxu0
        %v586 = vadd.f32 0.0, %v585
        %v587 = vpop.f32.mrb[0].mxu0
        %588 = vmatprep.mubr.f32.mxu0 0.0
        %589 = vmatmul.mubr.f32.gmra.mrb[0].mxu0 %v232
        %v590 = vpop.f32.mrb[0].mxu0
        %v591 = vadd.f32 0.0, %v590
        %v592 = vpop.f32.mrb[0].mxu0
        %593 = vmatprep.mubr.f32.mxu0 0.0
        %594 = vmatmul.mubr.f32.gmra.mrb[0].mxu0 %v233
        %v595 = vpop.f32.mrb[0].mxu0
        %v596 = vadd.f32 0.0, %v595
        %v597 = vpop.f32.mrb[0].mxu0
        %598 = vmatprep.mubr.f32.mxu0 0.0
        %599 = vmatmul.mubr.f32.gmra.mrb[0].mxu0 %v234
        %v600 = vpop.f32.mrb[0].mxu0
        %v601 = vadd.f32 0.0, %v600
        %v602 = vpop.f32.mrb[0].mxu0
        %603 = vmatprep.mubr.f32.mxu0 0.0
        %604 = vmatmul.mubr.f32.gmra.mrb[0].mxu0 %v235
        %v605 = vpop.f32.mrb[0].mxu0
        %v606 = vadd.f32 0.0, %v605
        %v607 = vpop.f32.mrb[0].mxu0
        %608 = vmatprep.mubr.f32.mxu0 0.0
        %609 = vmatmul.mubr.f32.gmra.mrb[0].mxu0 %v236
        %v610 = vpop.f32.mrb[0].mxu0
        %v611 = vadd.f32 0.0, %v610
        %v612 = vpop.f32.mrb[0].mxu0
        %613 = vmatprep.mubr.f32.mxu0 0.0
        %614 = vmatmul.mubr.f32.gmra.mrb[0].mxu0 %v237
        %v615 = vpop.f32.mrb[0].mxu0
        %v616 = vadd.f32 0.0, %v615
        %v617 = vpop.f32.mrb[0].mxu0
        %618 = vmatprep.mubr.f32.mxu0 0.0
        %619 = vmatmul.mubr.f32.gmra.mrb[0].mxu0 %v238
        %v620 = vpop.f32.mrb[0].mxu0
        %v621 = vadd.f32 0.0, %v620
        %v622 = vpop.f32.mrb[0].mxu0
        %623 = vmatprep.mubr.f32.mxu0 0.0
        %624 = vmatmul.mubr.f32.gmra.mrb[0].mxu0 %v239
        %v625 = vpop.f32.mrb[0].mxu0
        %v626 = vadd.f32 0.0, %v625
        %v627 = vpop.f32.mrb[0].mxu0
        %628 = vmatprep.mubr.f32.mxu0 0.0
        %629 = vmatmul.mubr.f32.gmra.mrb[0].mxu0 %v240
        %v630 = vpop.f32.mrb[0].mxu0
        %v631 = vadd.f32 0.0, %v630
        %v632 = vpop.f32.mrb[0].mxu0
        %633 = vmatprep.mubr.f32.mxu0 0.0
        %634 = vmatmul.mubr.f32.gmra.mrb[0].mxu0 %v241
        %v635 = vpop.f32.mrb[0].mxu0
        %v636 = vadd.f32 0.0, %v635
        %v637 = vpop.f32.mrb[0].mxu0
        %638 = vmatprep.mubr.f32.mxu0 0.0
        %639 = vmatmul.mubr.f32.gmra.mrb[0].mxu0 %v242
        %v640 = vpop.f32.mrb[0].mxu0
        %v641 = vadd.f32 0.0, %v640
        %v642 = vpop.f32.mrb[0].mxu0
        %643 = vdwg.mxu0
        %v644 = vmax.f32 %v326, 0.0
        %v645 = vmax.f32 %v331, 0.0
        %v646 = vmax.f32 %v336, 0.0
        %v647 = vmax.f32 %v341, 0.0
        %v648 = vmax.f32 %v346, 0.0
        %v649 = vmax.f32 %v351, 0.0
        %v650 = vmax.f32 %v356, 0.0
        %v651 = vmax.f32 %v361, 0.0
        %v652 = vmax.f32 %v366, 0.0
        %v653 = vmax.f32 %v371, 0.0
        %v654 = vmax.f32 %v376, 0.0
        %v655 = vmax.f32 %v381, 0.0
        %v656 = vmax.f32 %v386, 0.0
        %v657 = vmax.f32 %v391, 0.0
        %v658 = vmax.f32 %v396, 0.0
        %v659 = vmax.f32 %v401, 0.0
        %v660 = vmax.f32 %v406, 0.0
        %v661 = vmax.f32 %v411, 0.0
        %v662 = vmax.f32 %v416, 0.0
        %v663 = vmax.f32 %v421, 0.0
        %v664 = vmax.f32 %v426, 0.0
        %v665 = vmax.f32 %v431, 0.0
        %v666 = vmax.f32 %v436, 0.0
        %v667 = vmax.f32 %v441, 0.0
        %v668 = vmax.f32 %v446, 0.0
        %v669 = vmax.f32 %v451, 0.0
        %v670 = vmax.f32 %v456, 0.0
        %v671 = vmax.f32 %v461, 0.0
        %v672 = vmax.f32 %v466, 0.0
        %v673 = vmax.f32 %v471, 0.0
        %v674 = vmax.f32 %v476, 0.0
        %v675 = vmax.f32 %v481, 0.0
        %v676 = vmax.f32 %v486, 0.0
        %v677 = vmax.f32 %v491, 0.0
        %v678 = vmax.f32 %v496, 0.0
        %v679 = vmax.f32 %v501, 0.0
        %v680 = vmax.f32 %v506, 0.0
        %v681 = vmax.f32 %v511, 0.0
        %v682 = vmax.f32 %v516, 0.0
        %v683 = vmax.f32 %v521, 0.0
        %v684 = vmax.f32 %v526, 0.0
        %v685 = vmax.f32 %v531, 0.0
        %v686 = vmax.f32 %v536, 0.0
        %v687 = vmax.f32 %v541, 0.0
        %v688 = vmax.f32 %v546, 0.0
        %v689 = vmax.f32 %v551, 0.0
        %v690 = vmax.f32 %v556, 0.0
        %v691 = vmax.f32 %v561, 0.0
        %v692 = vmax.f32 %v566, 0.0
        %v693 = vmax.f32 %v571, 0.0
        %v694 = vmax.f32 %v576, 0.0
        %v695 = vmax.f32 %v581, 0.0
        %v696 = vmax.f32 %v586, 0.0
        %v697 = vmax.f32 %v591, 0.0
        %v698 = vmax.f32 %v596, 0.0
        %v699 = vmax.f32 %v601, 0.0
        %v700 = vmax.f32 %v606, 0.0
        %v701 = vmax.f32 %v611, 0.0
        %v702 = vmax.f32 %v616, 0.0
        %v703 = vmax.f32 %v621, 0.0
        %v704 = vmax.f32 %v626, 0.0
        %v705 = vmax.f32 %v631, 0.0
        %v706 = vmax.f32 %v636, 0.0
        %v707 = vmax.f32 %v641, 0.0
        %s708 = scalar_lea.vmem [#allocation5], 128
        %v709 = vld [vmem:[%s708] sm:$0xff]
        %v710 = vld [vmem:[%s708 + $0x8] sm:$0xff]
        %v711 = vld [vmem:[%s708 + $0x10] sm:$0xff]
        %v712 = vld [vmem:[%s708 + $0x18] sm:$0xff]
        %v713 = vld [vmem:[%s708 + $0x20] sm:$0xff]
        %v714 = vld [vmem:[%s708 + $0x28] sm:$0xff]
        %v715 = vld [vmem:[%s708 + $0x30] sm:$0xff]
        %v716 = vld [vmem:[%s708 + $0x38] sm:$0xff]
        %v717 = vld [vmem:[%s708 + $0x40] sm:$0xff]
        %v718 = vld [vmem:[%s708 + $0x48] sm:$0xff]
        %v719 = vld [vmem:[%s708 + $0x50] sm:$0xff]
        %v720 = vld [vmem:[%s708 + $0x58] sm:$0xff]
        %v721 = vld [vmem:[%s708 + $0x60] sm:$0xff]
        %v722 = vld [vmem:[%s708 + $0x68] sm:$0xff]
        %v723 = vld [vmem:[%s708 + $0x70] sm:$0xff]
        %v724 = vld [vmem:[%s708 + $0x78] sm:$0xff]
        %725 = vmatprep.subr.mxu0 0.0
        %726 = vmatpush1.msra.mxu0 %v709
        %727 = vmatprep.subr.mxu0 0.0
        %728 = vmatpush1.msra.mxu0 %v710
        %729 = vmatprep.subr.mxu0 0.0
        %730 = vmatpush1.msra.mxu0 %v711
        %731 = vmatprep.subr.mxu0 0.0
        %732 = vmatpush1.msra.mxu0 %v712
        %733 = vmatprep.subr.mxu0 0.0
        %734 = vmatpush1.msra.mxu0 %v713
        %735 = vmatprep.subr.mxu0 0.0
        %736 = vmatpush1.msra.mxu0 %v714
        %737 = vmatprep.subr.mxu0 0.0
        %738 = vmatpush1.msra.mxu0 %v715
        %739 = vmatprep.subr.mxu0 0.0
        %740 = vmatpush1.msra.mxu0 %v716
        %741 = vmatprep.subr.mxu0 0.0
        %742 = vmatpush1.msra.mxu0 %v717
        %743 = vmatprep.subr.mxu0 0.0
        %744 = vmatpush1.msra.mxu0 %v718
        %745 = vmatprep.subr.mxu0 0.0
        %746 = vmatpush1.msra.mxu0 %v719
        %747 = vmatprep.subr.mxu0 0.0
        %748 = vmatpush1.msra.mxu0 %v720
        %749 = vmatprep.subr.mxu0 0.0
        %750 = vmatpush1.msra.mxu0 %v721
        %751 = vmatprep.subr.mxu0 0.0
        %752 = vmatpush1.msra.mxu0 %v722
        %753 = vmatprep.subr.mxu0 0.0
        %754 = vmatpush1.msra.mxu0 %v723
        %755 = vmatprep.subr.mxu0 0.0
        %756 = vmatpush1.msra.mxu0 %v724
        %757 = vmatprep.subr.mxu0 0.0
        %758 = vmatpush1.msra.mxu0 0.0
        %759 = vmatprep.subr.mxu0 0.0
        %760 = vmatpush1.msra.mxu0 0.0
        %761 = vmatprep.subr.mxu0 0.0
        %762 = vmatpush1.msra.mxu0 0.0
        %763 = vmatprep.subr.mxu0 0.0
        %764 = vmatpush1.msra.mxu0 0.0
        %765 = vmatprep.subr.mxu0 0.0
        %766 = vmatpush1.msra.mxu0 0.0
        %767 = vmatprep.subr.mxu0 0.0
        %768 = vmatpush1.msra.mxu0 0.0
        %769 = vmatprep.subr.mxu0 0.0
        %770 = vmatpush1.msra.mxu0 0.0
        %771 = vmatprep.subr.mxu0 0.0
        %772 = vmatpush1.msra.mxu0 0.0
        %773 = vmatprep.subr.mxu0 0.0
        %774 = vmatpush1.msra.mxu0 0.0
        %775 = vmatprep.subr.mxu0 0.0
        %776 = vmatpush1.msra.mxu0 0.0
        %777 = vmatprep.subr.mxu0 0.0
        %778 = vmatpush1.msra.mxu0 0.0
        %779 = vmatprep.subr.mxu0 0.0
        %780 = vmatpush1.msra.mxu0 0.0
        %781 = vmatprep.subr.mxu0 0.0
        %782 = vmatpush1.msra.mxu0 0.0
        %783 = vmatprep.subr.mxu0 0.0
        %784 = vmatpush1.msra.mxu0 0.0
        %785 = vmatprep.subr.mxu0 0.0
        %786 = vmatpush1.msra.mxu0 0.0
        %787 = vmatprep.subr.mxu0 0.0
        %788 = vmatpush1.msra.mxu0 0.0
        %789 = vmatprep.mubr.f32.mxu0 0.0
        %790 = vmatmul.mubr.f32.gmra.mrb[0].mxu0 %v644
        %v791 = vpop.f32.mrb[0].mxu0
        %v792 = vadd.f32 0.0, %v791
        %v793 = vpop.f32.mrb[0].mxu0
        %794 = vmatprep.mubr.f32.mxu0 0.0
        %795 = vmatmul.mubr.f32.gmra.mrb[0].mxu0 %v645
        %v796 = vpop.f32.mrb[0].mxu0
        %v797 = vadd.f32 0.0, %v796
        %v798 = vpop.f32.mrb[0].mxu0
        %799 = vmatprep.mubr.f32.mxu0 0.0
        %800 = vmatmul.mubr.f32.gmra.mrb[0].mxu0 %v646
        %v801 = vpop.f32.mrb[0].mxu0
        %v802 = vadd.f32 0.0, %v801
        %v803 = vpop.f32.mrb[0].mxu0
        %804 = vmatprep.mubr.f32.mxu0 0.0
        %805 = vmatmul.mubr.f32.gmra.mrb[0].mxu0 %v647
        %v806 = vpop.f32.mrb[0].mxu0
        %v807 = vadd.f32 0.0, %v806
        %v808 = vpop.f32.mrb[0].mxu0
        %809 = vmatprep.mubr.f32.mxu0 0.0
        %810 = vmatmul.mubr.f32.gmra.mrb[0].mxu0 %v648
        %v811 = vpop.f32.mrb[0].mxu0
        %v812 = vadd.f32 0.0, %v811
        %v813 = vpop.f32.mrb[0].mxu0
        %814 = vmatprep.mubr.f32.mxu0 0.0
        %815 = vmatmul.mubr.f32.gmra.mrb[0].mxu0 %v649
        %v816 = vpop.f32.mrb[0].mxu0
        %v817 = vadd.f32 0.0, %v816
        %v818 = vpop.f32.mrb[0].mxu0
        %819 = vmatprep.mubr.f32.mxu0 0.0
        %820 = vmatmul.mubr.f32.gmra.mrb[0].mxu0 %v650
        %v821 = vpop.f32.mrb[0].mxu0
        %v822 = vadd.f32 0.0, %v821
        %v823 = vpop.f32.mrb[0].mxu0
        %824 = vmatprep.mubr.f32.mxu0 0.0
        %825 = vmatmul.mubr.f32.gmra.mrb[0].mxu0 %v651
        %v826 = vpop.f32.mrb[0].mxu0
        %v827 = vadd.f32 0.0, %v826
        %v828 = vpop.f32.mrb[0].mxu0
        %829 = vmatprep.mubr.f32.mxu0 0.0
        %830 = vmatmul.mubr.f32.gmra.mrb[0].mxu0 %v652
        %v831 = vpop.f32.mrb[0].mxu0
        %v832 = vadd.f32 0.0, %v831
        %v833 = vpop.f32.mrb[0].mxu0
        %834 = vmatprep.mubr.f32.mxu0 0.0
        %835 = vmatmul.mubr.f32.gmra.mrb[0].mxu0 %v653
        %v836 = vpop.f32.mrb[0].mxu0
        %v837 = vadd.f32 0.0, %v836
        %v838 = vpop.f32.mrb[0].mxu0
        %839 = vmatprep.mubr.f32.mxu0 0.0
        %840 = vmatmul.mubr.f32.gmra.mrb[0].mxu0 %v654
        %v841 = vpop.f32.mrb[0].mxu0
        %v842 = vadd.f32 0.0, %v841
        %v843 = vpop.f32.mrb[0].mxu0
        %844 = vmatprep.mubr.f32.mxu0 0.0
        %845 = vmatmul.mubr.f32.gmra.mrb[0].mxu0 %v655
        %v846 = vpop.f32.mrb[0].mxu0
        %v847 = vadd.f32 0.0, %v846
        %v848 = vpop.f32.mrb[0].mxu0
        %849 = vmatprep.mubr.f32.mxu0 0.0
        %850 = vmatmul.mubr.f32.gmra.mrb[0].mxu0 %v656
        %v851 = vpop.f32.mrb[0].mxu0
        %v852 = vadd.f32 0.0, %v851
        %v853 = vpop.f32.mrb[0].mxu0
        %854 = vmatprep.mubr.f32.mxu0 0.0
        %855 = vmatmul.mubr.f32.gmra.mrb[0].mxu0 %v657
        %v856 = vpop.f32.mrb[0].mxu0
        %v857 = vadd.f32 0.0, %v856
        %v858 = vpop.f32.mrb[0].mxu0
        %859 = vmatprep.mubr.f32.mxu0 0.0
        %860 = vmatmul.mubr.f32.gmra.mrb[0].mxu0 %v658
        %v861 = vpop.f32.mrb[0].mxu0
        %v862 = vadd.f32 0.0, %v861
        %v863 = vpop.f32.mrb[0].mxu0
        %864 = vmatprep.mubr.f32.mxu0 0.0
        %865 = vmatmul.mubr.f32.gmra.mrb[0].mxu0 %v659
        %v866 = vpop.f32.mrb[0].mxu0
        %v867 = vadd.f32 0.0, %v866
        %v868 = vpop.f32.mrb[0].mxu0
        %869 = vmatprep.mubr.f32.mxu0 0.0
        %870 = vmatmul.mubr.f32.gmra.mrb[0].mxu0 %v660
        %v871 = vpop.f32.mrb[0].mxu0
        %v872 = vadd.f32 0.0, %v871
        %v873 = vpop.f32.mrb[0].mxu0
        %874 = vmatprep.mubr.f32.mxu0 0.0
        %875 = vmatmul.mubr.f32.gmra.mrb[0].mxu0 %v661
        %v876 = vpop.f32.mrb[0].mxu0
        %v877 = vadd.f32 0.0, %v876
        %v878 = vpop.f32.mrb[0].mxu0
        %879 = vmatprep.mubr.f32.mxu0 0.0
        %880 = vmatmul.mubr.f32.gmra.mrb[0].mxu0 %v662
        %v881 = vpop.f32.mrb[0].mxu0
        %v882 = vadd.f32 0.0, %v881
        %v883 = vpop.f32.mrb[0].mxu0
        %884 = vmatprep.mubr.f32.mxu0 0.0
        %885 = vmatmul.mubr.f32.gmra.mrb[0].mxu0 %v663
        %v886 = vpop.f32.mrb[0].mxu0
        %v887 = vadd.f32 0.0, %v886
        %v888 = vpop.f32.mrb[0].mxu0
        %889 = vmatprep.mubr.f32.mxu0 0.0
        %890 = vmatmul.mubr.f32.gmra.mrb[0].mxu0 %v664
        %v891 = vpop.f32.mrb[0].mxu0
        %v892 = vadd.f32 0.0, %v891
        %v893 = vpop.f32.mrb[0].mxu0
        %894 = vmatprep.mubr.f32.mxu0 0.0
        %895 = vmatmul.mubr.f32.gmra.mrb[0].mxu0 %v665
        %v896 = vpop.f32.mrb[0].mxu0
        %v897 = vadd.f32 0.0, %v896
        %v898 = vpop.f32.mrb[0].mxu0
        %899 = vmatprep.mubr.f32.mxu0 0.0
        %900 = vmatmul.mubr.f32.gmra.mrb[0].mxu0 %v666
        %v901 = vpop.f32.mrb[0].mxu0
        %v902 = vadd.f32 0.0, %v901
        %v903 = vpop.f32.mrb[0].mxu0
        %904 = vmatprep.mubr.f32.mxu0 0.0
        %905 = vmatmul.mubr.f32.gmra.mrb[0].mxu0 %v667
        %v906 = vpop.f32.mrb[0].mxu0
        %v907 = vadd.f32 0.0, %v906
        %v908 = vpop.f32.mrb[0].mxu0
        %909 = vmatprep.mubr.f32.mxu0 0.0
        %910 = vmatmul.mubr.f32.gmra.mrb[0].mxu0 %v668
        %v911 = vpop.f32.mrb[0].mxu0
        %v912 = vadd.f32 0.0, %v911
        %v913 = vpop.f32.mrb[0].mxu0
        %914 = vmatprep.mubr.f32.mxu0 0.0
        %915 = vmatmul.mubr.f32.gmra.mrb[0].mxu0 %v669
        %v916 = vpop.f32.mrb[0].mxu0
        %v917 = vadd.f32 0.0, %v916
        %v918 = vpop.f32.mrb[0].mxu0
        %919 = vmatprep.mubr.f32.mxu0 0.0
        %920 = vmatmul.mubr.f32.gmra.mrb[0].mxu0 %v670
        %v921 = vpop.f32.mrb[0].mxu0
        %v922 = vadd.f32 0.0, %v921
        %v923 = vpop.f32.mrb[0].mxu0
        %924 = vmatprep.mubr.f32.mxu0 0.0
        %925 = vmatmul.mubr.f32.gmra.mrb[0].mxu0 %v671
        %v926 = vpop.f32.mrb[0].mxu0
        %v927 = vadd.f32 0.0, %v926
        %v928 = vpop.f32.mrb[0].mxu0
        %929 = vmatprep.mubr.f32.mxu0 0.0
        %930 = vmatmul.mubr.f32.gmra.mrb[0].mxu0 %v672
        %v931 = vpop.f32.mrb[0].mxu0
        %v932 = vadd.f32 0.0, %v931
        %v933 = vpop.f32.mrb[0].mxu0
        %934 = vmatprep.mubr.f32.mxu0 0.0
        %935 = vmatmul.mubr.f32.gmra.mrb[0].mxu0 %v673
        %v936 = vpop.f32.mrb[0].mxu0
        %v937 = vadd.f32 0.0, %v936
        %v938 = vpop.f32.mrb[0].mxu0
        %939 = vmatprep.mubr.f32.mxu0 0.0
        %940 = vmatmul.mubr.f32.gmra.mrb[0].mxu0 %v674
        %v941 = vpop.f32.mrb[0].mxu0
        %v942 = vadd.f32 0.0, %v941
        %v943 = vpop.f32.mrb[0].mxu0
        %944 = vmatprep.mubr.f32.mxu0 0.0
        %945 = vmatmul.mubr.f32.gmra.mrb[0].mxu0 %v675
        %v946 = vpop.f32.mrb[0].mxu0
        %v947 = vadd.f32 0.0, %v946
        %v948 = vpop.f32.mrb[0].mxu0
        %949 = vmatprep.mubr.f32.mxu0 0.0
        %950 = vmatmul.mubr.f32.gmra.mrb[0].mxu0 %v676
        %v951 = vpop.f32.mrb[0].mxu0
        %v952 = vadd.f32 0.0, %v951
        %v953 = vpop.f32.mrb[0].mxu0
        %954 = vmatprep.mubr.f32.mxu0 0.0
        %955 = vmatmul.mubr.f32.gmra.mrb[0].mxu0 %v677
        %v956 = vpop.f32.mrb[0].mxu0
        %v957 = vadd.f32 0.0, %v956
        %v958 = vpop.f32.mrb[0].mxu0
        %959 = vmatprep.mubr.f32.mxu0 0.0
        %960 = vmatmul.mubr.f32.gmra.mrb[0].mxu0 %v678
        %v961 = vpop.f32.mrb[0].mxu0
        %v962 = vadd.f32 0.0, %v961
        %v963 = vpop.f32.mrb[0].mxu0
        %964 = vmatprep.mubr.f32.mxu0 0.0
        %965 = vmatmul.mubr.f32.gmra.mrb[0].mxu0 %v679
        %v966 = vpop.f32.mrb[0].mxu0
        %v967 = vadd.f32 0.0, %v966
        %v968 = vpop.f32.mrb[0].mxu0
        %969 = vmatprep.mubr.f32.mxu0 0.0
        %970 = vmatmul.mubr.f32.gmra.mrb[0].mxu0 %v680
        %v971 = vpop.f32.mrb[0].mxu0
        %v972 = vadd.f32 0.0, %v971
        %v973 = vpop.f32.mrb[0].mxu0
        %974 = vmatprep.mubr.f32.mxu0 0.0
        %975 = vmatmul.mubr.f32.gmra.mrb[0].mxu0 %v681
        %v976 = vpop.f32.mrb[0].mxu0
        %v977 = vadd.f32 0.0, %v976
        %v978 = vpop.f32.mrb[0].mxu0
        %979 = vmatprep.mubr.f32.mxu0 0.0
        %980 = vmatmul.mubr.f32.gmra.mrb[0].mxu0 %v682
        %v981 = vpop.f32.mrb[0].mxu0
        %v982 = vadd.f32 0.0, %v981
        %v983 = vpop.f32.mrb[0].mxu0
        %984 = vmatprep.mubr.f32.mxu0 0.0
        %985 = vmatmul.mubr.f32.gmra.mrb[0].mxu0 %v683
        %v986 = vpop.f32.mrb[0].mxu0
        %v987 = vadd.f32 0.0, %v986
        %v988 = vpop.f32.mrb[0].mxu0
        %989 = vmatprep.mubr.f32.mxu0 0.0
        %990 = vmatmul.mubr.f32.gmra.mrb[0].mxu0 %v684
        %v991 = vpop.f32.mrb[0].mxu0
        %v992 = vadd.f32 0.0, %v991
        %v993 = vpop.f32.mrb[0].mxu0
        %994 = vmatprep.mubr.f32.mxu0 0.0
        %995 = vmatmul.mubr.f32.gmra.mrb[0].mxu0 %v685
        %v996 = vpop.f32.mrb[0].mxu0
        %v997 = vadd.f32 0.0, %v996
        %v998 = vpop.f32.mrb[0].mxu0
        %999 = vmatprep.mubr.f32.mxu0 0.0
        %1000 = vmatmul.mubr.f32.gmra.mrb[0].mxu0 %v686
        %v1001 = vpop.f32.mrb[0].mxu0
        %v1002 = vadd.f32 0.0, %v1001
        %v1003 = vpop.f32.mrb[0].mxu0
        %1004 = vmatprep.mubr.f32.mxu0 0.0
        %1005 = vmatmul.mubr.f32.gmra.mrb[0].mxu0 %v687
        %v1006 = vpop.f32.mrb[0].mxu0
        %v1007 = vadd.f32 0.0, %v1006
        %v1008 = vpop.f32.mrb[0].mxu0
        %1009 = vmatprep.mubr.f32.mxu0 0.0
        %1010 = vmatmul.mubr.f32.gmra.mrb[0].mxu0 %v688
        %v1011 = vpop.f32.mrb[0].mxu0
        %v1012 = vadd.f32 0.0, %v1011
        %v1013 = vpop.f32.mrb[0].mxu0
        %1014 = vmatprep.mubr.f32.mxu0 0.0
        %1015 = vmatmul.mubr.f32.gmra.mrb[0].mxu0 %v689
        %v1016 = vpop.f32.mrb[0].mxu0
        %v1017 = vadd.f32 0.0, %v1016
        %v1018 = vpop.f32.mrb[0].mxu0
        %1019 = vmatprep.mubr.f32.mxu0 0.0
        %1020 = vmatmul.mubr.f32.gmra.mrb[0].mxu0 %v690
        %v1021 = vpop.f32.mrb[0].mxu0
        %v1022 = vadd.f32 0.0, %v1021
        %v1023 = vpop.f32.mrb[0].mxu0
        %1024 = vmatprep.mubr.f32.mxu0 0.0
        %1025 = vmatmul.mubr.f32.gmra.mrb[0].mxu0 %v691
        %v1026 = vpop.f32.mrb[0].mxu0
        %v1027 = vadd.f32 0.0, %v1026
        %v1028 = vpop.f32.mrb[0].mxu0
        %1029 = vmatprep.mubr.f32.mxu0 0.0
        %1030 = vmatmul.mubr.f32.gmra.mrb[0].mxu0 %v692
        %v1031 = vpop.f32.mrb[0].mxu0
        %v1032 = vadd.f32 0.0, %v1031
        %v1033 = vpop.f32.mrb[0].mxu0
        %1034 = vmatprep.mubr.f32.mxu0 0.0
        %1035 = vmatmul.mubr.f32.gmra.mrb[0].mxu0 %v693
        %v1036 = vpop.f32.mrb[0].mxu0
        %v1037 = vadd.f32 0.0, %v1036
        %v1038 = vpop.f32.mrb[0].mxu0
        %1039 = vmatprep.mubr.f32.mxu0 0.0
        %1040 = vmatmul.mubr.f32.gmra.mrb[0].mxu0 %v694
        %v1041 = vpop.f32.mrb[0].mxu0
        %v1042 = vadd.f32 0.0, %v1041
        %v1043 = vpop.f32.mrb[0].mxu0
        %1044 = vmatprep.mubr.f32.mxu0 0.0
        %1045 = vmatmul.mubr.f32.gmra.mrb[0].mxu0 %v695
        %v1046 = vpop.f32.mrb[0].mxu0
        %v1047 = vadd.f32 0.0, %v1046
        %v1048 = vpop.f32.mrb[0].mxu0
        %1049 = vmatprep.mubr.f32.mxu0 0.0
        %1050 = vmatmul.mubr.f32.gmra.mrb[0].mxu0 %v696
        %v1051 = vpop.f32.mrb[0].mxu0
        %v1052 = vadd.f32 0.0, %v1051
        %v1053 = vpop.f32.mrb[0].mxu0
        %1054 = vmatprep.mubr.f32.mxu0 0.0
        %1055 = vmatmul.mubr.f32.gmra.mrb[0].mxu0 %v697
        %v1056 = vpop.f32.mrb[0].mxu0
        %v1057 = vadd.f32 0.0, %v1056
        %v1058 = vpop.f32.mrb[0].mxu0
        %1059 = vmatprep.mubr.f32.mxu0 0.0
        %1060 = vmatmul.mubr.f32.gmra.mrb[0].mxu0 %v698
        %v1061 = vpop.f32.mrb[0].mxu0
        %v1062 = vadd.f32 0.0, %v1061
        %v1063 = vpop.f32.mrb[0].mxu0
        %1064 = vmatprep.mubr.f32.mxu0 0.0
        %1065 = vmatmul.mubr.f32.gmra.mrb[0].mxu0 %v699
        %v1066 = vpop.f32.mrb[0].mxu0
        %v1067 = vadd.f32 0.0, %v1066
        %v1068 = vpop.f32.mrb[0].mxu0
        %1069 = vmatprep.mubr.f32.mxu0 0.0
        %1070 = vmatmul.mubr.f32.gmra.mrb[0].mxu0 %v700
        %v1071 = vpop.f32.mrb[0].mxu0
        %v1072 = vadd.f32 0.0, %v1071
        %v1073 = vpop.f32.mrb[0].mxu0
        %1074 = vmatprep.mubr.f32.mxu0 0.0
        %1075 = vmatmul.mubr.f32.gmra.mrb[0].mxu0 %v701
        %v1076 = vpop.f32.mrb[0].mxu0
        %v1077 = vadd.f32 0.0, %v1076
        %v1078 = vpop.f32.mrb[0].mxu0
        %1079 = vmatprep.mubr.f32.mxu0 0.0
        %1080 = vmatmul.mubr.f32.gmra.mrb[0].mxu0 %v702
        %v1081 = vpop.f32.mrb[0].mxu0
        %v1082 = vadd.f32 0.0, %v1081
        %v1083 = vpop.f32.mrb[0].mxu0
        %1084 = vmatprep.mubr.f32.mxu0 0.0
        %1085 = vmatmul.mubr.f32.gmra.mrb[0].mxu0 %v703
        %v1086 = vpop.f32.mrb[0].mxu0
        %v1087 = vadd.f32 0.0, %v1086
        %v1088 = vpop.f32.mrb[0].mxu0
        %1089 = vmatprep.mubr.f32.mxu0 0.0
        %1090 = vmatmul.mubr.f32.gmra.mrb[0].mxu0 %v704
        %v1091 = vpop.f32.mrb[0].mxu0
        %v1092 = vadd.f32 0.0, %v1091
        %v1093 = vpop.f32.mrb[0].mxu0
        %1094 = vmatprep.mubr.f32.mxu0 0.0
        %1095 = vmatmul.mubr.f32.gmra.mrb[0].mxu0 %v705
        %v1096 = vpop.f32.mrb[0].mxu0
        %v1097 = vadd.f32 0.0, %v1096
        %v1098 = vpop.f32.mrb[0].mxu0
        %1099 = vmatprep.mubr.f32.mxu0 0.0
        %1100 = vmatmul.mubr.f32.gmra.mrb[0].mxu0 %v706
        %v1101 = vpop.f32.mrb[0].mxu0
        %v1102 = vadd.f32 0.0, %v1101
        %v1103 = vpop.f32.mrb[0].mxu0
        %1104 = vmatprep.mubr.f32.mxu0 0.0
        %1105 = vmatmul.mubr.f32.gmra.mrb[0].mxu0 %v707
        %v1106 = vpop.f32.mrb[0].mxu0
        %v1107 = vadd.f32 0.0, %v1106
        %v1108 = vpop.f32.mrb[0].mxu0
        %1109 = vdwg.mxu0
        %v1110 = vmax.f32 %v792, 0.0
        %v1111 = vmax.f32 %v797, 0.0
        %v1112 = vmax.f32 %v802, 0.0
        %v1113 = vmax.f32 %v807, 0.0
        %v1114 = vmax.f32 %v812, 0.0
        %v1115 = vmax.f32 %v817, 0.0
        %v1116 = vmax.f32 %v822, 0.0
        %v1117 = vmax.f32 %v827, 0.0
        %v1118 = vmax.f32 %v832, 0.0
        %v1119 = vmax.f32 %v837, 0.0
        %v1120 = vmax.f32 %v842, 0.0
        %v1121 = vmax.f32 %v847, 0.0
        %v1122 = vmax.f32 %v852, 0.0
        %v1123 = vmax.f32 %v857, 0.0
        %v1124 = vmax.f32 %v862, 0.0
        %v1125 = vmax.f32 %v867, 0.0
        %v1126 = vmax.f32 %v872, 0.0
        %v1127 = vmax.f32 %v877, 0.0
        %v1128 = vmax.f32 %v882, 0.0
        %v1129 = vmax.f32 %v887, 0.0
        %v1130 = vmax.f32 %v892, 0.0
        %v1131 = vmax.f32 %v897, 0.0
        %v1132 = vmax.f32 %v902, 0.0
        %v1133 = vmax.f32 %v907, 0.0
        %v1134 = vmax.f32 %v912, 0.0
        %v1135 = vmax.f32 %v917, 0.0
        %v1136 = vmax.f32 %v922, 0.0
        %v1137 = vmax.f32 %v927, 0.0
        %v1138 = vmax.f32 %v932, 0.0
        %v1139 = vmax.f32 %v937, 0.0
        %v1140 = vmax.f32 %v942, 0.0
        %v1141 = vmax.f32 %v947, 0.0
        %v1142 = vmax.f32 %v952, 0.0
        %v1143 = vmax.f32 %v957, 0.0
        %v1144 = vmax.f32 %v962, 0.0
        %v1145 = vmax.f32 %v967, 0.0
        %v1146 = vmax.f32 %v972, 0.0
        %v1147 = vmax.f32 %v977, 0.0
        %v1148 = vmax.f32 %v982, 0.0
        %v1149 = vmax.f32 %v987, 0.0
        %v1150 = vmax.f32 %v992, 0.0
        %v1151 = vmax.f32 %v997, 0.0
        %v1152 = vmax.f32 %v1002, 0.0
        %v1153 = vmax.f32 %v1007, 0.0
        %v1154 = vmax.f32 %v1012, 0.0
        %v1155 = vmax.f32 %v1017, 0.0
        %v1156 = vmax.f32 %v1022, 0.0
        %v1157 = vmax.f32 %v1027, 0.0
        %v1158 = vmax.f32 %v1032, 0.0
        %v1159 = vmax.f32 %v1037, 0.0
        %v1160 = vmax.f32 %v1042, 0.0
        %v1161 = vmax.f32 %v1047, 0.0
        %v1162 = vmax.f32 %v1052, 0.0
        %v1163 = vmax.f32 %v1057, 0.0
        %v1164 = vmax.f32 %v1062, 0.0
        %v1165 = vmax.f32 %v1067, 0.0
        %v1166 = vmax.f32 %v1072, 0.0
        %v1167 = vmax.f32 %v1077, 0.0
        %v1168 = vmax.f32 %v1082, 0.0
        %v1169 = vmax.f32 %v1087, 0.0
        %v1170 = vmax.f32 %v1092, 0.0
        %v1171 = vmax.f32 %v1097, 0.0
        %v1172 = vmax.f32 %v1102, 0.0
        %v1173 = vmax.f32 %v1107, 0.0
        %s1174 = scalar_lea.vmem [#allocation5], 256
        %v1175 = vld [vmem:[%s1174] sm:$0xff]
        %v1176 = vld [vmem:[%s1174 + $0x8] sm:$0xff]
        %v1177 = vld [vmem:[%s1174 + $0x10] sm:$0xff]
        %v1178 = vld [vmem:[%s1174 + $0x18] sm:$0xff]
        %v1179 = vld [vmem:[%s1174 + $0x20] sm:$0xff]
        %v1180 = vld [vmem:[%s1174 + $0x28] sm:$0xff]
        %v1181 = vld [vmem:[%s1174 + $0x30] sm:$0xff]
        %v1182 = vld [vmem:[%s1174 + $0x38] sm:$0xff]
        %v1183 = vld [vmem:[%s1174 + $0x40] sm:$0xff]
        %v1184 = vld [vmem:[%s1174 + $0x48] sm:$0xff]
        %v1185 = vld [vmem:[%s1174 + $0x50] sm:$0xff]
        %v1186 = vld [vmem:[%s1174 + $0x58] sm:$0xff]
        %v1187 = vld [vmem:[%s1174 + $0x60] sm:$0xff]
        %v1188 = vld [vmem:[%s1174 + $0x68] sm:$0xff]
        %v1189 = vld [vmem:[%s1174 + $0x70] sm:$0xff]
        %v1190 = vld [vmem:[%s1174 + $0x78] sm:$0xff]
        %1191 = vmatprep.subr.mxu0 0.0
        %1192 = vmatpush1.msra.mxu0 %v1175
        %1193 = vmatprep.subr.mxu0 0.0
        %1194 = vmatpush1.msra.mxu0 %v1176
        %1195 = vmatprep.subr.mxu0 0.0
        %1196 = vmatpush1.msra.mxu0 %v1177
        %1197 = vmatprep.subr.mxu0 0.0
        %1198 = vmatpush1.msra.mxu0 %v1178
        %1199 = vmatprep.subr.mxu0 0.0
        %1200 = vmatpush1.msra.mxu0 %v1179
        %1201 = vmatprep.subr.mxu0 0.0
        %1202 = vmatpush1.msra.mxu0 %v1180
        %1203 = vmatprep.subr.mxu0 0.0
        %1204 = vmatpush1.msra.mxu0 %v1181
        %1205 = vmatprep.subr.mxu0 0.0
        %1206 = vmatpush1.msra.mxu0 %v1182
        %1207 = vmatprep.subr.mxu0 0.0
        %1208 = vmatpush1.msra.mxu0 %v1183
        %1209 = vmatprep.subr.mxu0 0.0
        %1210 = vmatpush1.msra.mxu0 %v1184
        %1211 = vmatprep.subr.mxu0 0.0
        %1212 = vmatpush1.msra.mxu0 %v1185
        %1213 = vmatprep.subr.mxu0 0.0
        %1214 = vmatpush1.msra.mxu0 %v1186
        %1215 = vmatprep.subr.mxu0 0.0
        %1216 = vmatpush1.msra.mxu0 %v1187
        %1217 = vmatprep.subr.mxu0 0.0
        %1218 = vmatpush1.msra.mxu0 %v1188
        %1219 = vmatprep.subr.mxu0 0.0
        %1220 = vmatpush1.msra.mxu0 %v1189
        %1221 = vmatprep.subr.mxu0 0.0
        %1222 = vmatpush1.msra.mxu0 %v1190
        %1223 = vmatprep.subr.mxu0 0.0
        %1224 = vmatpush1.msra.mxu0 0.0
        %1225 = vmatprep.subr.mxu0 0.0
        %1226 = vmatpush1.msra.mxu0 0.0
        %1227 = vmatprep.subr.mxu0 0.0
        %1228 = vmatpush1.msra.mxu0 0.0
        %1229 = vmatprep.subr.mxu0 0.0
        %1230 = vmatpush1.msra.mxu0 0.0
        %1231 = vmatprep.subr.mxu0 0.0
        %1232 = vmatpush1.msra.mxu0 0.0
        %1233 = vmatprep.subr.mxu0 0.0
        %1234 = vmatpush1.msra.mxu0 0.0
        %1235 = vmatprep.subr.mxu0 0.0
        %1236 = vmatpush1.msra.mxu0 0.0
        %1237 = vmatprep.subr.mxu0 0.0
        %1238 = vmatpush1.msra.mxu0 0.0
        %1239 = vmatprep.subr.mxu0 0.0
        %1240 = vmatpush1.msra.mxu0 0.0
        %1241 = vmatprep.subr.mxu0 0.0
        %1242 = vmatpush1.msra.mxu0 0.0
        %1243 = vmatprep.subr.mxu0 0.0
        %1244 = vmatpush1.msra.mxu0 0.0
        %1245 = vmatprep.subr.mxu0 0.0
        %1246 = vmatpush1.msra.mxu0 0.0
        %1247 = vmatprep.subr.mxu0 0.0
        %1248 = vmatpush1.msra.mxu0 0.0
        %1249 = vmatprep.subr.mxu0 0.0
        %1250 = vmatpush1.msra.mxu0 0.0
        %1251 = vmatprep.subr.mxu0 0.0
        %1252 = vmatpush1.msra.mxu0 0.0
        %1253 = vmatprep.subr.mxu0 0.0
        %1254 = vmatpush1.msra.mxu0 0.0
        %1255 = vmatprep.mubr.f32.mxu0 0.0
        %1256 = vmatmul.mubr.f32.gmra.mrb[0].mxu0 %v1110
        %v1257 = vpop.f32.mrb[0].mxu0
        %v1258 = vadd.f32 0.0, %v1257
        %v1259 = vpop.f32.mrb[0].mxu0
        %1260 = vmatprep.mubr.f32.mxu0 0.0
        %1261 = vmatmul.mubr.f32.gmra.mrb[0].mxu0 %v1111
        %v1262 = vpop.f32.mrb[0].mxu0
        %v1263 = vadd.f32 0.0, %v1262
        %v1264 = vpop.f32.mrb[0].mxu0
        %1265 = vmatprep.mubr.f32.mxu0 0.0
        %1266 = vmatmul.mubr.f32.gmra.mrb[0].mxu0 %v1112
        %v1267 = vpop.f32.mrb[0].mxu0
        %v1268 = vadd.f32 0.0, %v1267
        %v1269 = vpop.f32.mrb[0].mxu0
        %1270 = vmatprep.mubr.f32.mxu0 0.0
        %1271 = vmatmul.mubr.f32.gmra.mrb[0].mxu0 %v1113
        %v1272 = vpop.f32.mrb[0].mxu0
        %v1273 = vadd.f32 0.0, %v1272
        %v1274 = vpop.f32.mrb[0].mxu0
        %1275 = vmatprep.mubr.f32.mxu0 0.0
        %1276 = vmatmul.mubr.f32.gmra.mrb[0].mxu0 %v1114
        %v1277 = vpop.f32.mrb[0].mxu0
        %v1278 = vadd.f32 0.0, %v1277
        %v1279 = vpop.f32.mrb[0].mxu0
        %1280 = vmatprep.mubr.f32.mxu0 0.0
        %1281 = vmatmul.mubr.f32.gmra.mrb[0].mxu0 %v1115
        %v1282 = vpop.f32.mrb[0].mxu0
        %v1283 = vadd.f32 0.0, %v1282
        %v1284 = vpop.f32.mrb[0].mxu0
        %1285 = vmatprep.mubr.f32.mxu0 0.0
        %1286 = vmatmul.mubr.f32.gmra.mrb[0].mxu0 %v1116
        %v1287 = vpop.f32.mrb[0].mxu0
        %v1288 = vadd.f32 0.0, %v1287
        %v1289 = vpop.f32.mrb[0].mxu0
        %1290 = vmatprep.mubr.f32.mxu0 0.0
        %1291 = vmatmul.mubr.f32.gmra.mrb[0].mxu0 %v1117
        %v1292 = vpop.f32.mrb[0].mxu0
        %v1293 = vadd.f32 0.0, %v1292
        %v1294 = vpop.f32.mrb[0].mxu0
        %1295 = vmatprep.mubr.f32.mxu0 0.0
        %1296 = vmatmul.mubr.f32.gmra.mrb[0].mxu0 %v1118
        %v1297 = vpop.f32.mrb[0].mxu0
        %v1298 = vadd.f32 0.0, %v1297
        %v1299 = vpop.f32.mrb[0].mxu0
        %1300 = vmatprep.mubr.f32.mxu0 0.0
        %1301 = vmatmul.mubr.f32.gmra.mrb[0].mxu0 %v1119
        %v1302 = vpop.f32.mrb[0].mxu0
        %v1303 = vadd.f32 0.0, %v1302
        %v1304 = vpop.f32.mrb[0].mxu0
        %1305 = vmatprep.mubr.f32.mxu0 0.0
        %1306 = vmatmul.mubr.f32.gmra.mrb[0].mxu0 %v1120
        %v1307 = vpop.f32.mrb[0].mxu0
        %v1308 = vadd.f32 0.0, %v1307
        %v1309 = vpop.f32.mrb[0].mxu0
        %1310 = vmatprep.mubr.f32.mxu0 0.0
        %1311 = vmatmul.mubr.f32.gmra.mrb[0].mxu0 %v1121
        %v1312 = vpop.f32.mrb[0].mxu0
        %v1313 = vadd.f32 0.0, %v1312
        %v1314 = vpop.f32.mrb[0].mxu0
        %1315 = vmatprep.mubr.f32.mxu0 0.0
        %1316 = vmatmul.mubr.f32.gmra.mrb[0].mxu0 %v1122
        %v1317 = vpop.f32.mrb[0].mxu0
        %v1318 = vadd.f32 0.0, %v1317
        %v1319 = vpop.f32.mrb[0].mxu0
        %1320 = vmatprep.mubr.f32.mxu0 0.0
        %1321 = vmatmul.mubr.f32.gmra.mrb[0].mxu0 %v1123
        %v1322 = vpop.f32.mrb[0].mxu0
        %v1323 = vadd.f32 0.0, %v1322
        %v1324 = vpop.f32.mrb[0].mxu0
        %1325 = vmatprep.mubr.f32.mxu0 0.0
        %1326 = vmatmul.mubr.f32.gmra.mrb[0].mxu0 %v1124
        %v1327 = vpop.f32.mrb[0].mxu0
        %v1328 = vadd.f32 0.0, %v1327
        %v1329 = vpop.f32.mrb[0].mxu0
        %1330 = vmatprep.mubr.f32.mxu0 0.0
        %1331 = vmatmul.mubr.f32.gmra.mrb[0].mxu0 %v1125
        %v1332 = vpop.f32.mrb[0].mxu0
        %v1333 = vadd.f32 0.0, %v1332
        %v1334 = vpop.f32.mrb[0].mxu0
        %1335 = vmatprep.mubr.f32.mxu0 0.0
        %1336 = vmatmul.mubr.f32.gmra.mrb[0].mxu0 %v1126
        %v1337 = vpop.f32.mrb[0].mxu0
        %v1338 = vadd.f32 0.0, %v1337
        %v1339 = vpop.f32.mrb[0].mxu0
        %1340 = vmatprep.mubr.f32.mxu0 0.0
        %1341 = vmatmul.mubr.f32.gmra.mrb[0].mxu0 %v1127
        %v1342 = vpop.f32.mrb[0].mxu0
        %v1343 = vadd.f32 0.0, %v1342
        %v1344 = vpop.f32.mrb[0].mxu0
        %1345 = vmatprep.mubr.f32.mxu0 0.0
        %1346 = vmatmul.mubr.f32.gmra.mrb[0].mxu0 %v1128
        %v1347 = vpop.f32.mrb[0].mxu0
        %v1348 = vadd.f32 0.0, %v1347
        %v1349 = vpop.f32.mrb[0].mxu0
        %1350 = vmatprep.mubr.f32.mxu0 0.0
        %1351 = vmatmul.mubr.f32.gmra.mrb[0].mxu0 %v1129
        %v1352 = vpop.f32.mrb[0].mxu0
        %v1353 = vadd.f32 0.0, %v1352
        %v1354 = vpop.f32.mrb[0].mxu0
        %1355 = vmatprep.mubr.f32.mxu0 0.0
        %1356 = vmatmul.mubr.f32.gmra.mrb[0].mxu0 %v1130
        %v1357 = vpop.f32.mrb[0].mxu0
        %v1358 = vadd.f32 0.0, %v1357
        %v1359 = vpop.f32.mrb[0].mxu0
        %1360 = vmatprep.mubr.f32.mxu0 0.0
        %1361 = vmatmul.mubr.f32.gmra.mrb[0].mxu0 %v1131
        %v1362 = vpop.f32.mrb[0].mxu0
        %v1363 = vadd.f32 0.0, %v1362
        %v1364 = vpop.f32.mrb[0].mxu0
        %1365 = vmatprep.mubr.f32.mxu0 0.0
        %1366 = vmatmul.mubr.f32.gmra.mrb[0].mxu0 %v1132
        %v1367 = vpop.f32.mrb[0].mxu0
        %v1368 = vadd.f32 0.0, %v1367
        %v1369 = vpop.f32.mrb[0].mxu0
        %1370 = vmatprep.mubr.f32.mxu0 0.0
        %1371 = vmatmul.mubr.f32.gmra.mrb[0].mxu0 %v1133
        %v1372 = vpop.f32.mrb[0].mxu0
        %v1373 = vadd.f32 0.0, %v1372
        %v1374 = vpop.f32.mrb[0].mxu0
        %1375 = vmatprep.mubr.f32.mxu0 0.0
        %1376 = vmatmul.mubr.f32.gmra.mrb[0].mxu0 %v1134
        %v1377 = vpop.f32.mrb[0].mxu0
        %v1378 = vadd.f32 0.0, %v1377
        %v1379 = vpop.f32.mrb[0].mxu0
        %1380 = vmatprep.mubr.f32.mxu0 0.0
        %1381 = vmatmul.mubr.f32.gmra.mrb[0].mxu0 %v1135
        %v1382 = vpop.f32.mrb[0].mxu0
        %v1383 = vadd.f32 0.0, %v1382
        %v1384 = vpop.f32.mrb[0].mxu0
        %1385 = vmatprep.mubr.f32.mxu0 0.0
        %1386 = vmatmul.mubr.f32.gmra.mrb[0].mxu0 %v1136
        %v1387 = vpop.f32.mrb[0].mxu0
        %v1388 = vadd.f32 0.0, %v1387
        %v1389 = vpop.f32.mrb[0].mxu0
        %1390 = vmatprep.mubr.f32.mxu0 0.0
        %1391 = vmatmul.mubr.f32.gmra.mrb[0].mxu0 %v1137
        %v1392 = vpop.f32.mrb[0].mxu0
        %v1393 = vadd.f32 0.0, %v1392
        %v1394 = vpop.f32.mrb[0].mxu0
        %1395 = vmatprep.mubr.f32.mxu0 0.0
        %1396 = vmatmul.mubr.f32.gmra.mrb[0].mxu0 %v1138
        %v1397 = vpop.f32.mrb[0].mxu0
        %v1398 = vadd.f32 0.0, %v1397
        %v1399 = vpop.f32.mrb[0].mxu0
        %1400 = vmatprep.mubr.f32.mxu0 0.0
        %1401 = vmatmul.mubr.f32.gmra.mrb[0].mxu0 %v1139
        %v1402 = vpop.f32.mrb[0].mxu0
        %v1403 = vadd.f32 0.0, %v1402
        %v1404 = vpop.f32.mrb[0].mxu0
        %1405 = vmatprep.mubr.f32.mxu0 0.0
        %1406 = vmatmul.mubr.f32.gmra.mrb[0].mxu0 %v1140
        %v1407 = vpop.f32.mrb[0].mxu0
        %v1408 = vadd.f32 0.0, %v1407
        %v1409 = vpop.f32.mrb[0].mxu0
        %1410 = vmatprep.mubr.f32.mxu0 0.0
        %1411 = vmatmul.mubr.f32.gmra.mrb[0].mxu0 %v1141
        %v1412 = vpop.f32.mrb[0].mxu0
        %v1413 = vadd.f32 0.0, %v1412
        %v1414 = vpop.f32.mrb[0].mxu0
        %1415 = vmatprep.mubr.f32.mxu0 0.0
        %1416 = vmatmul.mubr.f32.gmra.mrb[0].mxu0 %v1142
        %v1417 = vpop.f32.mrb[0].mxu0
        %v1418 = vadd.f32 0.0, %v1417
        %v1419 = vpop.f32.mrb[0].mxu0
        %1420 = vmatprep.mubr.f32.mxu0 0.0
        %1421 = vmatmul.mubr.f32.gmra.mrb[0].mxu0 %v1143
        %v1422 = vpop.f32.mrb[0].mxu0
        %v1423 = vadd.f32 0.0, %v1422
        %v1424 = vpop.f32.mrb[0].mxu0
        %1425 = vmatprep.mubr.f32.mxu0 0.0
        %1426 = vmatmul.mubr.f32.gmra.mrb[0].mxu0 %v1144
        %v1427 = vpop.f32.mrb[0].mxu0
        %v1428 = vadd.f32 0.0, %v1427
        %v1429 = vpop.f32.mrb[0].mxu0
        %1430 = vmatprep.mubr.f32.mxu0 0.0
        %1431 = vmatmul.mubr.f32.gmra.mrb[0].mxu0 %v1145
        %v1432 = vpop.f32.mrb[0].mxu0
        %v1433 = vadd.f32 0.0, %v1432
        %v1434 = vpop.f32.mrb[0].mxu0
        %1435 = vmatprep.mubr.f32.mxu0 0.0
        %1436 = vmatmul.mubr.f32.gmra.mrb[0].mxu0 %v1146
        %v1437 = vpop.f32.mrb[0].mxu0
        %v1438 = vadd.f32 0.0, %v1437
        %v1439 = vpop.f32.mrb[0].mxu0
        %1440 = vmatprep.mubr.f32.mxu0 0.0
        %1441 = vmatmul.mubr.f32.gmra.mrb[0].mxu0 %v1147
        %v1442 = vpop.f32.mrb[0].mxu0
        %v1443 = vadd.f32 0.0, %v1442
        %v1444 = vpop.f32.mrb[0].mxu0
        %1445 = vmatprep.mubr.f32.mxu0 0.0
        %1446 = vmatmul.mubr.f32.gmra.mrb[0].mxu0 %v1148
        %v1447 = vpop.f32.mrb[0].mxu0
        %v1448 = vadd.f32 0.0, %v1447
        %v1449 = vpop.f32.mrb[0].mxu0
        %1450 = vmatprep.mubr.f32.mxu0 0.0
        %1451 = vmatmul.mubr.f32.gmra.mrb[0].mxu0 %v1149
        %v1452 = vpop.f32.mrb[0].mxu0
        %v1453 = vadd.f32 0.0, %v1452
        %v1454 = vpop.f32.mrb[0].mxu0
        %1455 = vmatprep.mubr.f32.mxu0 0.0
        %1456 = vmatmul.mubr.f32.gmra.mrb[0].mxu0 %v1150
        %v1457 = vpop.f32.mrb[0].mxu0
        %v1458 = vadd.f32 0.0, %v1457
        %v1459 = vpop.f32.mrb[0].mxu0
        %1460 = vmatprep.mubr.f32.mxu0 0.0
        %1461 = vmatmul.mubr.f32.gmra.mrb[0].mxu0 %v1151
        %v1462 = vpop.f32.mrb[0].mxu0
        %v1463 = vadd.f32 0.0, %v1462
        %v1464 = vpop.f32.mrb[0].mxu0
        %1465 = vmatprep.mubr.f32.mxu0 0.0
        %1466 = vmatmul.mubr.f32.gmra.mrb[0].mxu0 %v1152
        %v1467 = vpop.f32.mrb[0].mxu0
        %v1468 = vadd.f32 0.0, %v1467
        %v1469 = vpop.f32.mrb[0].mxu0
        %1470 = vmatprep.mubr.f32.mxu0 0.0
        %1471 = vmatmul.mubr.f32.gmra.mrb[0].mxu0 %v1153
        %v1472 = vpop.f32.mrb[0].mxu0
        %v1473 = vadd.f32 0.0, %v1472
        %v1474 = vpop.f32.mrb[0].mxu0
        %1475 = vmatprep.mubr.f32.mxu0 0.0
        %1476 = vmatmul.mubr.f32.gmra.mrb[0].mxu0 %v1154
        %v1477 = vpop.f32.mrb[0].mxu0
        %v1478 = vadd.f32 0.0, %v1477
        %v1479 = vpop.f32.mrb[0].mxu0
        %1480 = vmatprep.mubr.f32.mxu0 0.0
        %1481 = vmatmul.mubr.f32.gmra.mrb[0].mxu0 %v1155
        %v1482 = vpop.f32.mrb[0].mxu0
        %v1483 = vadd.f32 0.0, %v1482
        %v1484 = vpop.f32.mrb[0].mxu0
        %1485 = vmatprep.mubr.f32.mxu0 0.0
        %1486 = vmatmul.mubr.f32.gmra.mrb[0].mxu0 %v1156
        %v1487 = vpop.f32.mrb[0].mxu0
        %v1488 = vadd.f32 0.0, %v1487
        %v1489 = vpop.f32.mrb[0].mxu0
        %1490 = vmatprep.mubr.f32.mxu0 0.0
        %1491 = vmatmul.mubr.f32.gmra.mrb[0].mxu0 %v1157
        %v1492 = vpop.f32.mrb[0].mxu0
        %v1493 = vadd.f32 0.0, %v1492
        %v1494 = vpop.f32.mrb[0].mxu0
        %1495 = vmatprep.mubr.f32.mxu0 0.0
        %1496 = vmatmul.mubr.f32.gmra.mrb[0].mxu0 %v1158
        %v1497 = vpop.f32.mrb[0].mxu0
        %v1498 = vadd.f32 0.0, %v1497
        %v1499 = vpop.f32.mrb[0].mxu0
        %1500 = vmatprep.mubr.f32.mxu0 0.0
        %1501 = vmatmul.mubr.f32.gmra.mrb[0].mxu0 %v1159
        %v1502 = vpop.f32.mrb[0].mxu0
        %v1503 = vadd.f32 0.0, %v1502
        %v1504 = vpop.f32.mrb[0].mxu0
        %1505 = vmatprep.mubr.f32.mxu0 0.0
        %1506 = vmatmul.mubr.f32.gmra.mrb[0].mxu0 %v1160
        %v1507 = vpop.f32.mrb[0].mxu0
        %v1508 = vadd.f32 0.0, %v1507
        %v1509 = vpop.f32.mrb[0].mxu0
        %1510 = vmatprep.mubr.f32.mxu0 0.0
        %1511 = vmatmul.mubr.f32.gmra.mrb[0].mxu0 %v1161
        %v1512 = vpop.f32.mrb[0].mxu0
        %v1513 = vadd.f32 0.0, %v1512
        %v1514 = vpop.f32.mrb[0].mxu0
        %1515 = vmatprep.mubr.f32.mxu0 0.0
        %1516 = vmatmul.mubr.f32.gmra.mrb[0].mxu0 %v1162
        %v1517 = vpop.f32.mrb[0].mxu0
        %v1518 = vadd.f32 0.0, %v1517
        %v1519 = vpop.f32.mrb[0].mxu0
        %1520 = vmatprep.mubr.f32.mxu0 0.0
        %1521 = vmatmul.mubr.f32.gmra.mrb[0].mxu0 %v1163
        %v1522 = vpop.f32.mrb[0].mxu0
        %v1523 = vadd.f32 0.0, %v1522
        %v1524 = vpop.f32.mrb[0].mxu0
        %1525 = vmatprep.mubr.f32.mxu0 0.0
        %1526 = vmatmul.mubr.f32.gmra.mrb[0].mxu0 %v1164
        %v1527 = vpop.f32.mrb[0].mxu0
        %v1528 = vadd.f32 0.0, %v1527
        %v1529 = vpop.f32.mrb[0].mxu0
        %1530 = vmatprep.mubr.f32.mxu0 0.0
        %1531 = vmatmul.mubr.f32.gmra.mrb[0].mxu0 %v1165
        %v1532 = vpop.f32.mrb[0].mxu0
        %v1533 = vadd.f32 0.0, %v1532
        %v1534 = vpop.f32.mrb[0].mxu0
        %1535 = vmatprep.mubr.f32.mxu0 0.0
        %1536 = vmatmul.mubr.f32.gmra.mrb[0].mxu0 %v1166
        %v1537 = vpop.f32.mrb[0].mxu0
        %v1538 = vadd.f32 0.0, %v1537
        %v1539 = vpop.f32.mrb[0].mxu0
        %1540 = vmatprep.mubr.f32.mxu0 0.0
        %1541 = vmatmul.mubr.f32.gmra.mrb[0].mxu0 %v1167
        %v1542 = vpop.f32.mrb[0].mxu0
        %v1543 = vadd.f32 0.0, %v1542
        %v1544 = vpop.f32.mrb[0].mxu0
        %1545 = vmatprep.mubr.f32.mxu0 0.0
        %1546 = vmatmul.mubr.f32.gmra.mrb[0].mxu0 %v1168
        %v1547 = vpop.f32.mrb[0].mxu0
        %v1548 = vadd.f32 0.0, %v1547
        %v1549 = vpop.f32.mrb[0].mxu0
        %1550 = vmatprep.mubr.f32.mxu0 0.0
        %1551 = vmatmul.mubr.f32.gmra.mrb[0].mxu0 %v1169
        %v1552 = vpop.f32.mrb[0].mxu0
        %v1553 = vadd.f32 0.0, %v1552
        %v1554 = vpop.f32.mrb[0].mxu0
        %1555 = vmatprep.mubr.f32.mxu0 0.0
        %1556 = vmatmul.mubr.f32.gmra.mrb[0].mxu0 %v1170
        %v1557 = vpop.f32.mrb[0].mxu0
        %v1558 = vadd.f32 0.0, %v1557
        %v1559 = vpop.f32.mrb[0].mxu0
        %1560 = vmatprep.mubr.f32.mxu0 0.0
        %1561 = vmatmul.mubr.f32.gmra.mrb[0].mxu0 %v1171
        %v1562 = vpop.f32.mrb[0].mxu0
        %v1563 = vadd.f32 0.0, %v1562
        %v1564 = vpop.f32.mrb[0].mxu0
        %1565 = vmatprep.mubr.f32.mxu0 0.0
        %1566 = vmatmul.mubr.f32.gmra.mrb[0].mxu0 %v1172
        %v1567 = vpop.f32.mrb[0].mxu0
        %v1568 = vadd.f32 0.0, %v1567
        %v1569 = vpop.f32.mrb[0].mxu0
        %1570 = vmatprep.mubr.f32.mxu0 0.0
        %1571 = vmatmul.mubr.f32.gmra.mrb[0].mxu0 %v1173
        %v1572 = vpop.f32.mrb[0].mxu0
        %v1573 = vadd.f32 0.0, %v1572
        %v1574 = vpop.f32.mrb[0].mxu0
        %1575 = vdwg.mxu0
        %1576 = vst [vmem:[%s176] sm:$0xff] %v1258
        %1577 = vst [vmem:[%s176 + $0x8] sm:$0xff] %v1263
        %1578 = vst [vmem:[%s176 + $0x10] sm:$0xff] %v1268
        %1579 = vst [vmem:[%s176 + $0x18] sm:$0xff] %v1273
        %1580 = vst [vmem:[%s176 + $0x20] sm:$0xff] %v1278
        %1581 = vst [vmem:[%s176 + $0x28] sm:$0xff] %v1283
        %1582 = vst [vmem:[%s176 + $0x30] sm:$0xff] %v1288
        %1583 = vst [vmem:[%s176 + $0x38] sm:$0xff] %v1293
        %1584 = vst [vmem:[%s176 + $0x40] sm:$0xff] %v1298
        %1585 = vst [vmem:[%s176 + $0x48] sm:$0xff] %v1303
        %1586 = vst [vmem:[%s176 + $0x50] sm:$0xff] %v1308
        %1587 = vst [vmem:[%s176 + $0x58] sm:$0xff] %v1313
        %1588 = vst [vmem:[%s176 + $0x60] sm:$0xff] %v1318
        %1589 = vst [vmem:[%s176 + $0x68] sm:$0xff] %v1323
        %1590 = vst [vmem:[%s176 + $0x70] sm:$0xff] %v1328
        %1591 = vst [vmem:[%s176 + $0x78] sm:$0xff] %v1333
        %1592 = vst [vmem:[%s176 + $0x80] sm:$0xff] %v1338
        %1593 = vst [vmem:[%s176 + $0x88] sm:$0xff] %v1343
        %1594 = vst [vmem:[%s176 + $0x90] sm:$0xff] %v1348
        %1595 = vst [vmem:[%s176 + $0x98] sm:$0xff] %v1353
        %1596 = vst [vmem:[%s176 + $0xa0] sm:$0xff] %v1358
        %1597 = vst [vmem:[%s176 + $0xa8] sm:$0xff] %v1363
        %1598 = vst [vmem:[%s176 + $0xb0] sm:$0xff] %v1368
        %1599 = vst [vmem:[%s176 + $0xb8] sm:$0xff] %v1373
        %1600 = vst [vmem:[%s176 + $0xc0] sm:$0xff] %v1378
        %1601 = vst [vmem:[%s176 + $0xc8] sm:$0xff] %v1383
        %1602 = vst [vmem:[%s176 + $0xd0] sm:$0xff] %v1388
        %1603 = vst [vmem:[%s176 + $0xd8] sm:$0xff] %v1393
        %1604 = vst [vmem:[%s176 + $0xe0] sm:$0xff] %v1398
        %1605 = vst [vmem:[%s176 + $0xe8] sm:$0xff] %v1403
        %1606 = vst [vmem:[%s176 + $0xf0] sm:$0xff] %v1408
        %1607 = vst [vmem:[%s176 + $0xf8] sm:$0xff] %v1413
        %1608 = vst [vmem:[%s176 + $0x100] sm:$0xff] %v1418
        %1609 = vst [vmem:[%s176 + $0x108] sm:$0xff] %v1423
        %1610 = vst [vmem:[%s176 + $0x110] sm:$0xff] %v1428
        %1611 = vst [vmem:[%s176 + $0x118] sm:$0xff] %v1433
        %1612 = vst [vmem:[%s176 + $0x120] sm:$0xff] %v1438
        %1613 = vst [vmem:[%s176 + $0x128] sm:$0xff] %v1443
        %1614 = vst [vmem:[%s176 + $0x130] sm:$0xff] %v1448
        %1615 = vst [vmem:[%s176 + $0x138] sm:$0xff] %v1453
        %1616 = vst [vmem:[%s176 + $0x140] sm:$0xff] %v1458
        %1617 = vst [vmem:[%s176 + $0x148] sm:$0xff] %v1463
        %1618 = vst [vmem:[%s176 + $0x150] sm:$0xff] %v1468
        %1619 = vst [vmem:[%s176 + $0x158] sm:$0xff] %v1473
        %1620 = vst [vmem:[%s176 + $0x160] sm:$0xff] %v1478
        %1621 = vst [vmem:[%s176 + $0x168] sm:$0xff] %v1483
        %1622 = vst [vmem:[%s176 + $0x170] sm:$0xff] %v1488
        %1623 = vst [vmem:[%s176 + $0x178] sm:$0xff] %v1493
        %1624 = vst [vmem:[%s176 + $0x180] sm:$0xff] %v1498
        %1625 = vst [vmem:[%s176 + $0x188] sm:$0xff] %v1503
        %1626 = vst [vmem:[%s176 + $0x190] sm:$0xff] %v1508
        %1627 = vst [vmem:[%s176 + $0x198] sm:$0xff] %v1513
        %1628 = vst [vmem:[%s176 + $0x1a0] sm:$0xff] %v1518
        %1629 = vst [vmem:[%s176 + $0x1a8] sm:$0xff] %v1523
        %1630 = vst [vmem:[%s176 + $0x1b0] sm:$0xff] %v1528
        %1631 = vst [vmem:[%s176 + $0x1b8] sm:$0xff] %v1533
        %1632 = vst [vmem:[%s176 + $0x1c0] sm:$0xff] %v1538
        %1633 = vst [vmem:[%s176 + $0x1c8] sm:$0xff] %v1543
        %1634 = vst [vmem:[%s176 + $0x1d0] sm:$0xff] %v1548
        %1635 = vst [vmem:[%s176 + $0x1d8] sm:$0xff] %v1553
        %1636 = vst [vmem:[%s176 + $0x1e0] sm:$0xff] %v1558
        %1637 = vst [vmem:[%s176 + $0x1e8] sm:$0xff] %v1563
        %1638 = vst [vmem:[%s176 + $0x1f0] sm:$0xff] %v1568
        %1639 = vst [vmem:[%s176 + $0x1f8] sm:$0xff] %v1573
        %s1640 = sand.u32 %s75, 1
        %s1641 = scalar_lea.sflag [#allocation4], %s1640
        %s1642 = sand.u32 %s75, 1
        %s1643 = smul.addr %s1642, 512
        %s1644 = scalar_lea.vmem [#allocation7], %s1643
        // Predicated region
        $region37: #{tpu_custom_call.1} parent=27 // pred_check
          %p1645 = pneg %p85
        $region38: #{tpu_custom_call.1} parent=27 // pred_check_branch
          %1647 = sbr.rel (%p1645) target = $region40
        $region39: #{tpu_custom_call.1} parent=27 // pred_region
          %s1648 = smul.u32 64, %s20
          %s1650 = ssub.s32 8192, 8192
          %1651 = vsyncadd %s1641, %s1650
          %s1652 = smul.addr %s1648, 128
          %s1653 = scalar_lea.hbm %s2, %s1652
          %s1654 = sshll.u32 %s1644, 4
          %s1655 = int_to_ptr.vmem [resolvable:$true] %s1654
          %1660 = dma.vmem_to_hbm [thread:$0]  %s1655, 8192, %s1653, %s1641, 128, 128, 8
        $region40: #{tpu_custom_call.1} parent=27 // pred_fallthru
          _
      $region28: #{tpu_custom_call.1} parent=5 // pred_fallthru
        _
      %p1661 = scmp.le.s32.totalorder 2, %s15
      // Predicated region
      $region41: #{tpu_custom_call.1} parent=5 // pred_check
        %p1662 = pneg %p1661
      $region42: #{tpu_custom_call.1} parent=5 // pred_check_branch
        %1664 = sbr.rel (%p1662) target = $region44
      $region43: #{tpu_custom_call.1} parent=5 // pred_region
        %s1665 = ssub.s32 %s15, 2
        // Predicated region
        $region45: #{tpu_custom_call.1} parent=43 // pred_check
          %p1666 = pneg %p91
        $region46: #{tpu_custom_call.1} parent=43 // pred_check_branch
          %1668 = sbr.rel (%p1666) target = $region48
        $region47: #{tpu_custom_call.1} parent=43 // pred_region
          %s1669 = sand.u32 %s76, 1
          %s1670 = scalar_lea.sflag [#allocation4], %s1669
          %s1671 = sand.u32 %s76, 1
          %s1672 = smul.addr %s1671, 512
          %s1673 = scalar_lea.vmem [#allocation7], %s1672
          %1674 = dma.done %s1670, 8192
        $region48: #{tpu_custom_call.1} parent=43 // pred_fallthru
          _
      $region44: #{tpu_custom_call.1} parent=5 // pred_fallthru
        _
    $region6: #{tpu_custom_call.1} parent=1 // loop_footer
      %s19 = sadd.s32 1, %s15
    $region7: #{tpu_custom_call.1} parent=1 // loop_footer_branch
      %14 = sbr.rel target = $region3
    $region8: #{tpu_custom_call.1} parent=1 // loop_exit
      _
    %1675 = vsyncpa [#allocation3], 1
    %s1676 = scalar_lea.sflag [#allocation3], 1
    %1677 = vsyncpa %s1676, 1
    %1678 = vsyncpa [#allocation6], 1
    %1679 = vsyncpa [#allocation4], 1
    %s1680 = scalar_lea.sflag [#allocation4], 1
    %1681 = vsyncpa %s1680, 1

</llo_original>
